<compile_context>
chip_gen: v5e
topology: v5e:2x2
jax: 0.10.0
libtpu: 0.0.40
codegen_flags: <defaults>
</compile_context>

<pallas_src>
import jax
import jax.numpy as jnp
import numpy as np
from jax.experimental import pallas as pl
from jax.experimental.pallas import tpu as pltpu


def sggru_kernel(x_ref, wv_ref, u_ref, bx_ref, bh_ref, vr_ref, out_ref):
    T, B, n = x_ref.shape           # B, n already padded/tile-friendly
    d = u_ref.shape[-1]

    # ---- x-side gates, hoisted out of the recurrence --------------------
    # Vs @ W was folded into wv in the wrapper, so one matmul per gate does
    # both the spectral projection and the input-gate transform for ALL
    # time steps at once. bw (bx) is added once here.
    x2d = x_ref[...].reshape(T * B, n)           # tile-aligned retile (B % 8 == 0)
    gr_all = jnp.dot(x2d, wv_ref[0], preferred_element_type=jnp.float32) + bx_ref[0]
    gz_all = jnp.dot(x2d, wv_ref[1], preferred_element_type=jnp.float32) + bx_ref[1]
    gn_all = jnp.dot(x2d, wv_ref[2], preferred_element_type=jnp.float32) + bx_ref[2]

    # hoisted recurrent-bias broadcasts (computed once, reused every step)
    bh_r = jnp.broadcast_to(bh_ref[0], (B, d))
    bh_z = jnp.broadcast_to(bh_ref[1], (B, d))
    bh_n = jnp.broadcast_to(bh_ref[2], (B, d))

    u_r = u_ref[0]
    u_z = u_ref[1]
    u_n = u_ref[2]

    # ---- recurrence: only h @ U stays serial; fully unrolled (T static) --
    h = jnp.zeros((B, d), jnp.float32)
    for t in range(T):
        lo = t * B                               # multiple of 8 -> aligned slice
        gh_r = jnp.dot(h, u_r, preferred_element_type=jnp.float32) + bh_r
        gh_z = jnp.dot(h, u_z, preferred_element_type=jnp.float32) + bh_z
        gh_n = jnp.dot(h, u_n, preferred_element_type=jnp.float32) + bh_n
        r = jax.nn.sigmoid(gr_all[lo:lo + B] + gh_r)
        z = jax.nn.sigmoid(gz_all[lo:lo + B] + gh_z)
        nn_ = jnp.tanh(gn_all[lo:lo + B] + r * gh_n)
        h = (1.0 - z) * nn_ + z * h

    # ---- reconstruction across all graph vertices (lane-dense store) -----
    out_ref[...] = jnp.dot(
        h, vr_ref[...], preferred_element_type=jnp.float32
    ).astype(out_ref.dtype)


def _round_up(v, m):
    return (v + m - 1) // m * m


def sggru_forward(x, Vs, W, U, bw, bu, Vr):
    T, B, n = x.shape
    d = Vs.shape[1]
    N = Vr.shape[1]

    # fold the spectral projection into the input-side gate weights: (n, 3d)
    WVs = jnp.dot(Vs, W)

    # per-gate stacking: leading gate axis -> each gate slab is lane-aligned
    def split_gates(a):                      # (..., 3d) -> (3, ..., d)
        return jnp.stack(
            [a[..., 0 * d:1 * d], a[..., 1 * d:2 * d], a[..., 2 * d:3 * d]])

    WV = split_gates(WVs)                    # (3, n, d)
    Ug = split_gates(U)                      # (3, d, d)
    bx = split_gates(bw)                     # (3, 1, d)
    bh = split_gates(bu)                     # (3, 1, d)

    # pad batch to a full sublane group and N to full 128-lane tiles so all
    # per-step slices and the final output store are tile-aligned / unmasked
    B_pad = _round_up(B, 8)
    N_pad = _round_up(N, 128)
    x_p = jnp.pad(x, ((0, 0), (0, B_pad - B), (0, 0))) if B_pad != B else x
    Vr_p = jnp.pad(Vr, ((0, 0), (0, N_pad - N))) if N_pad != N else Vr

    out_p = pl.pallas_call(
        sggru_kernel,
        out_shape=jax.ShapeDtypeStruct((B_pad, N_pad), jnp.float32),
        grid_spec=pltpu.PrefetchScalarGridSpec(
            num_scalar_prefetch=0,
            grid=(1,),                                     # single invocation
            in_specs=[
                pl.BlockSpec((T, B_pad, n), lambda i: (0, 0, 0)),   # x (resident)
                pl.BlockSpec((3, n, d),     lambda i: (0, 0, 0)),   # Vs@W per gate
                pl.BlockSpec((3, d, d),     lambda i: (0, 0, 0)),   # U per gate
                pl.BlockSpec((3, 1, d),     lambda i: (0, 0, 0)),   # bw per gate
                pl.BlockSpec((3, 1, d),     lambda i: (0, 0, 0)),   # bu per gate
                pl.BlockSpec((d, N_pad),    lambda i: (0, 0)),      # Vr (padded)
            ],
            out_specs=pl.BlockSpec((B_pad, N_pad), lambda i: (0, 0)),
        ),
        compiler_params=pltpu.CompilerParams(
            dimension_semantics=("arbitrary",)),
    )(x_p, WV, Ug, bx, bh, Vr_p)

    return out_p[:B, :N]


def sggru_reference(x, Vs, W, U, bw, bu, Vr):
    """Pure-JAX reference of the same spectral-graph GRU."""
    T, B, n = x.shape
    d = Vs.shape[1]
    h = jnp.zeros((B, d), jnp.float32)
    for t in range(T):
        xs = x[t] @ Vs
        gx = xs @ W + bw
        gh = h @ U + bu
        r = jax.nn.sigmoid(gx[:, :d] + gh[:, :d])
        z = jax.nn.sigmoid(gx[:, d:2 * d] + gh[:, d:2 * d])
        nn_ = jnp.tanh(gx[:, 2 * d:] + r * gh[:, 2 * d:])
        h = (1.0 - z) * nn_ + z * h
    return h @ Vr


if __name__ == "__main__":
    # Small deterministic setup consistent with the module's __init__:
    #   V: (N, N) eigenvector matrix, sample: n node indices, freqs: d frequencies.
    N_nodes, n_sample, d_freq = 64, 16, 32
    T, B = 8, 4

    key = jax.random.PRNGKey(0)
    kV, kx, kW, kU, kbw, kbu = jax.random.split(key, 6)

    # synthetic orthonormal-ish eigenvector matrix (QR of a random matrix)
    V = jnp.linalg.qr(jax.random.normal(kV, (N_nodes, N_nodes), jnp.float32))[0]
    sample = jnp.arange(n_sample)          # in-sample node indices
    freqs = jnp.arange(d_freq)             # frequency components

    Vs = V[sample][:, freqs]               # (n, d)  sampled-node spectral basis
    Vr = V[:, freqs].T                     # (d, N)  reconstruction to all nodes

    # GRU parameters (deterministic init)
    scale = 0.1
    W = scale * jax.random.normal(kW, (d_freq, 3 * d_freq), jnp.float32)
    U = scale * jax.random.normal(kU, (d_freq, 3 * d_freq), jnp.float32)
    bw = scale * jax.random.normal(kbw, (1, 3 * d_freq), jnp.float32)
    bu = scale * jax.random.normal(kbu, (1, 3 * d_freq), jnp.float32)

    # input signal on the sampled vertices, time-major
    x = jax.random.normal(kx, (T, B, n_sample), jnp.float32)

    out = sggru_forward(x, Vs, W, U, bw, bu, Vr)
    out = jax.block_until_ready(out)

    ref = sggru_reference(x, Vs, W, U, bw, bu, Vr)
    np.testing.assert_allclose(np.asarray(out), np.asarray(ref), rtol=1e-4, atol=1e-4)

    print("KERNEL_OK")
</pallas_src>

<mosaic_0001>
module attributes {stable_mosaic.version = 11 : i64} {
  func.func @sggru_kernel(%arg0: i32, %arg1: memref<8x8x16xf32, #tpu.memory_space<vmem>>, %arg2: memref<3x16x32xf32, #tpu.memory_space<vmem>>, %arg3: memref<3x32x32xf32, #tpu.memory_space<vmem>>, %arg4: memref<3x1x32xf32, #tpu.memory_space<vmem>>, %arg5: memref<3x1x32xf32, #tpu.memory_space<vmem>>, %arg6: memref<32x128xf32, #tpu.memory_space<vmem>>, %arg7: memref<8x128xf32, #tpu.memory_space<vmem>>) attributes {dimension_semantics = [#tpu.dimension_semantics<arbitrary>], iteration_bounds = array<i64: 1>, scalar_prefetch = 0 : i64, scratch_operands = 0 : i64, tpu.core_type = #tpu.core_type<tc>, window_params = [{pipeline_mode = #tpu.pipeline_mode<synchronous>, transform_indices = @transform_0, window_bounds = array<i64: 8, 8, 16>}, {pipeline_mode = #tpu.pipeline_mode<synchronous>, transform_indices = @transform_1, window_bounds = array<i64: 3, 16, 32>}, {pipeline_mode = #tpu.pipeline_mode<synchronous>, transform_indices = @transform_2, window_bounds = array<i64: 3, 32, 32>}, {pipeline_mode = #tpu.pipeline_mode<synchronous>, transform_indices = @transform_3, window_bounds = array<i64: 3, 1, 32>}, {pipeline_mode = #tpu.pipeline_mode<synchronous>, transform_indices = @transform_4, window_bounds = array<i64: 3, 1, 32>}, {pipeline_mode = #tpu.pipeline_mode<synchronous>, transform_indices = @transform_5, window_bounds = array<i64: 32, 128>}, {pipeline_mode = #tpu.pipeline_mode<synchronous>, transform_indices = @transform_6, window_bounds = array<i64: 8, 128>}]} {
    %c0 = arith.constant 0 : index
    %c0_0 = arith.constant 0 : index
    %c0_1 = arith.constant 0 : index
    %0 = vector.load %arg1[%c0, %c0_0, %c0_1] : memref<8x8x16xf32, #tpu.memory_space<vmem>>, vector<8x8x16xf32>
    %1 = vector.shape_cast %0 : vector<8x8x16xf32> to vector<64x16xf32>
    %c0_2 = arith.constant 0 : index
    %c0_3 = arith.constant 0 : index
    %c0_4 = arith.constant 0 : index
    %2 = vector.load %arg2[%c0_2, %c0_3, %c0_4] : memref<3x16x32xf32, #tpu.memory_space<vmem>>, vector<1x16x32xf32>
    %3 = vector.shape_cast %2 : vector<1x16x32xf32> to vector<16x32xf32>
    %cst = arith.constant dense<0.000000e+00> : vector<64x32xf32>
    %4 = tpu.matmul %1, %3, %cst {dimension_numbers = #tpu.dot_dimension_numbers<[1], [0], [0], [1], [0, 0, 1, 1], [], []>} : vector<64x16xf32>, vector<16x32xf32>, vector<64x32xf32> -> vector<64x32xf32>
    %c0_5 = arith.constant 0 : index
    %c0_6 = arith.constant 0 : index
    %c0_7 = arith.constant 0 : index
    %5 = vector.load %arg4[%c0_5, %c0_6, %c0_7] : memref<3x1x32xf32, #tpu.memory_space<vmem>>, vector<1x1x32xf32>
    %6 = vector.shape_cast %5 : vector<1x1x32xf32> to vector<1x32xf32>
    %7 = vector.broadcast %6 : vector<1x32xf32> to vector<64x32xf32>
    %8 = arith.addf %4, %7 : vector<64x32xf32>
    %c1 = arith.constant 1 : index
    %c0_8 = arith.constant 0 : index
    %c0_9 = arith.constant 0 : index
    %9 = vector.load %arg2[%c1, %c0_8, %c0_9] : memref<3x16x32xf32, #tpu.memory_space<vmem>>, vector<1x16x32xf32>
    %10 = vector.shape_cast %9 : vector<1x16x32xf32> to vector<16x32xf32>
    %cst_10 = arith.constant dense<0.000000e+00> : vector<64x32xf32>
    %11 = tpu.matmul %1, %10, %cst_10 {dimension_numbers = #tpu.dot_dimension_numbers<[1], [0], [0], [1], [0, 0, 1, 1], [], []>} : vector<64x16xf32>, vector<16x32xf32>, vector<64x32xf32> -> vector<64x32xf32>
    %c1_11 = arith.constant 1 : index
    %c0_12 = arith.constant 0 : index
    %c0_13 = arith.constant 0 : index
    %12 = vector.load %arg4[%c1_11, %c0_12, %c0_13] : memref<3x1x32xf32, #tpu.memory_space<vmem>>, vector<1x1x32xf32>
    %13 = vector.shape_cast %12 : vector<1x1x32xf32> to vector<1x32xf32>
    %14 = vector.broadcast %13 : vector<1x32xf32> to vector<64x32xf32>
    %15 = arith.addf %11, %14 : vector<64x32xf32>
    %c2 = arith.constant 2 : index
    %c0_14 = arith.constant 0 : index
    %c0_15 = arith.constant 0 : index
    %16 = vector.load %arg2[%c2, %c0_14, %c0_15] : memref<3x16x32xf32, #tpu.memory_space<vmem>>, vector<1x16x32xf32>
    %17 = vector.shape_cast %16 : vector<1x16x32xf32> to vector<16x32xf32>
    %cst_16 = arith.constant dense<0.000000e+00> : vector<64x32xf32>
    %18 = tpu.matmul %1, %17, %cst_16 {dimension_numbers = #tpu.dot_dimension_numbers<[1], [0], [0], [1], [0, 0, 1, 1], [], []>} : vector<64x16xf32>, vector<16x32xf32>, vector<64x32xf32> -> vector<64x32xf32>
    %c2_17 = arith.constant 2 : index
    %c0_18 = arith.constant 0 : index
    %c0_19 = arith.constant 0 : index
    %19 = vector.load %arg4[%c2_17, %c0_18, %c0_19] : memref<3x1x32xf32, #tpu.memory_space<vmem>>, vector<1x1x32xf32>
    %20 = vector.shape_cast %19 : vector<1x1x32xf32> to vector<1x32xf32>
    %21 = vector.broadcast %20 : vector<1x32xf32> to vector<64x32xf32>
    %22 = arith.addf %18, %21 : vector<64x32xf32>
    %c0_20 = arith.constant 0 : index
    %c0_21 = arith.constant 0 : index
    %c0_22 = arith.constant 0 : index
    %23 = vector.load %arg5[%c0_20, %c0_21, %c0_22] : memref<3x1x32xf32, #tpu.memory_space<vmem>>, vector<1x1x32xf32>
    %24 = vector.shape_cast %23 : vector<1x1x32xf32> to vector<1x32xf32>
    %25 = vector.shape_cast %24 : vector<1x32xf32> to vector<1x32xf32>
    %26 = vector.broadcast %25 : vector<1x32xf32> to vector<8x32xf32>
    %c1_23 = arith.constant 1 : index
    %c0_24 = arith.constant 0 : index
    %c0_25 = arith.constant 0 : index
    %27 = vector.load %arg5[%c1_23, %c0_24, %c0_25] : memref<3x1x32xf32, #tpu.memory_space<vmem>>, vector<1x1x32xf32>
    %28 = vector.shape_cast %27 : vector<1x1x32xf32> to vector<1x32xf32>
    %29 = vector.shape_cast %28 : vector<1x32xf32> to vector<1x32xf32>
    %30 = vector.broadcast %29 : vector<1x32xf32> to vector<8x32xf32>
    %c2_26 = arith.constant 2 : index
    %c0_27 = arith.constant 0 : index
    %c0_28 = arith.constant 0 : index
    %31 = vector.load %arg5[%c2_26, %c0_27, %c0_28] : memref<3x1x32xf32, #tpu.memory_space<vmem>>, vector<1x1x32xf32>
    %32 = vector.shape_cast %31 : vector<1x1x32xf32> to vector<1x32xf32>
    %33 = vector.shape_cast %32 : vector<1x32xf32> to vector<1x32xf32>
    %34 = vector.broadcast %33 : vector<1x32xf32> to vector<8x32xf32>
    %c0_29 = arith.constant 0 : index
    %c0_30 = arith.constant 0 : index
    %c0_31 = arith.constant 0 : index
    %35 = vector.load %arg3[%c0_29, %c0_30, %c0_31] : memref<3x32x32xf32, #tpu.memory_space<vmem>>, vector<1x32x32xf32>
    %36 = vector.shape_cast %35 : vector<1x32x32xf32> to vector<32x32xf32>
    %c1_32 = arith.constant 1 : index
    %c0_33 = arith.constant 0 : index
    %c0_34 = arith.constant 0 : index
    %37 = vector.load %arg3[%c1_32, %c0_33, %c0_34] : memref<3x32x32xf32, #tpu.memory_space<vmem>>, vector<1x32x32xf32>
    %38 = vector.shape_cast %37 : vector<1x32x32xf32> to vector<32x32xf32>
    %c2_35 = arith.constant 2 : index
    %c0_36 = arith.constant 0 : index
    %c0_37 = arith.constant 0 : index
    %39 = vector.load %arg3[%c2_35, %c0_36, %c0_37] : memref<3x32x32xf32, #tpu.memory_space<vmem>>, vector<1x32x32xf32>
    %40 = vector.shape_cast %39 : vector<1x32x32xf32> to vector<32x32xf32>
    %cst_38 = arith.constant 0.000000e+00 : f32
    %41 = vector.broadcast %cst_38 : f32 to vector<8x32xf32>
    %cst_39 = arith.constant dense<0.000000e+00> : vector<8x32xf32>
    %42 = tpu.matmul %41, %36, %cst_39 {dimension_numbers = #tpu.dot_dimension_numbers<[1], [0], [0], [1], [0, 0, 1, 1], [], []>} : vector<8x32xf32>, vector<32x32xf32>, vector<8x32xf32> -> vector<8x32xf32>
    %43 = arith.addf %42, %26 : vector<8x32xf32>
    %cst_40 = arith.constant dense<0.000000e+00> : vector<8x32xf32>
    %44 = tpu.matmul %41, %38, %cst_40 {dimension_numbers = #tpu.dot_dimension_numbers<[1], [0], [0], [1], [0, 0, 1, 1], [], []>} : vector<8x32xf32>, vector<32x32xf32>, vector<8x32xf32> -> vector<8x32xf32>
    %45 = arith.addf %44, %30 : vector<8x32xf32>
    %cst_41 = arith.constant dense<0.000000e+00> : vector<8x32xf32>
    %46 = tpu.matmul %41, %40, %cst_41 {dimension_numbers = #tpu.dot_dimension_numbers<[1], [0], [0], [1], [0, 0, 1, 1], [], []>} : vector<8x32xf32>, vector<32x32xf32>, vector<8x32xf32> -> vector<8x32xf32>
    %47 = arith.addf %46, %34 : vector<8x32xf32>
    %48 = vector.extract_strided_slice %8 {offsets = [0, 0], sizes = [8, 32], strides = [1, 1]} : vector<64x32xf32> to vector<8x32xf32>
    %49 = arith.addf %48, %43 : vector<8x32xf32>
    %50 = arith.negf %49 : vector<8x32xf32>
    %51 = math.exp %50 : vector<8x32xf32>
    %cst_42 = arith.constant 1.000000e+00 : f32
    %52 = vector.broadcast %cst_42 : f32 to vector<8x32xf32>
    %53 = arith.addf %52, %51 : vector<8x32xf32>
    %54 = arith.divf %52, %53 : vector<8x32xf32>
    %55 = vector.extract_strided_slice %15 {offsets = [0, 0], sizes = [8, 32], strides = [1, 1]} : vector<64x32xf32> to vector<8x32xf32>
    %56 = arith.addf %55, %45 : vector<8x32xf32>
    %57 = arith.negf %56 : vector<8x32xf32>
    %58 = math.exp %57 : vector<8x32xf32>
    %cst_43 = arith.constant 1.000000e+00 : f32
    %59 = vector.broadcast %cst_43 : f32 to vector<8x32xf32>
    %60 = arith.addf %59, %58 : vector<8x32xf32>
    %61 = arith.divf %59, %60 : vector<8x32xf32>
    %62 = vector.extract_strided_slice %22 {offsets = [0, 0], sizes = [8, 32], strides = [1, 1]} : vector<64x32xf32> to vector<8x32xf32>
    %63 = arith.mulf %54, %47 : vector<8x32xf32>
    %64 = arith.addf %62, %63 : vector<8x32xf32>
    %65 = math.tanh %64 : vector<8x32xf32>
    %cst_44 = arith.constant 1.000000e+00 : f32
    %66 = vector.broadcast %cst_44 : f32 to vector<8x32xf32>
    %67 = arith.subf %66, %61 : vector<8x32xf32>
    %68 = arith.mulf %67, %65 : vector<8x32xf32>
    %69 = arith.mulf %61, %41 : vector<8x32xf32>
    %70 = arith.addf %68, %69 : vector<8x32xf32>
    %cst_45 = arith.constant dense<0.000000e+00> : vector<8x32xf32>
    %71 = tpu.matmul %70, %36, %cst_45 {dimension_numbers = #tpu.dot_dimension_numbers<[1], [0], [0], [1], [0, 0, 1, 1], [], []>} : vector<8x32xf32>, vector<32x32xf32>, vector<8x32xf32> -> vector<8x32xf32>
    %72 = arith.addf %71, %26 : vector<8x32xf32>
    %cst_46 = arith.constant dense<0.000000e+00> : vector<8x32xf32>
    %73 = tpu.matmul %70, %38, %cst_46 {dimension_numbers = #tpu.dot_dimension_numbers<[1], [0], [0], [1], [0, 0, 1, 1], [], []>} : vector<8x32xf32>, vector<32x32xf32>, vector<8x32xf32> -> vector<8x32xf32>
    %74 = arith.addf %73, %30 : vector<8x32xf32>
    %cst_47 = arith.constant dense<0.000000e+00> : vector<8x32xf32>
    %75 = tpu.matmul %70, %40, %cst_47 {dimension_numbers = #tpu.dot_dimension_numbers<[1], [0], [0], [1], [0, 0, 1, 1], [], []>} : vector<8x32xf32>, vector<32x32xf32>, vector<8x32xf32> -> vector<8x32xf32>
    %76 = arith.addf %75, %34 : vector<8x32xf32>
    %77 = vector.extract_strided_slice %8 {offsets = [8, 0], sizes = [8, 32], strides = [1, 1]} : vector<64x32xf32> to vector<8x32xf32>
    %78 = arith.addf %77, %72 : vector<8x32xf32>
    %79 = arith.negf %78 : vector<8x32xf32>
    %80 = math.exp %79 : vector<8x32xf32>
    %cst_48 = arith.constant 1.000000e+00 : f32
    %81 = vector.broadcast %cst_48 : f32 to vector<8x32xf32>
    %82 = arith.addf %81, %80 : vector<8x32xf32>
    %83 = arith.divf %81, %82 : vector<8x32xf32>
    %84 = vector.extract_strided_slice %15 {offsets = [8, 0], sizes = [8, 32], strides = [1, 1]} : vector<64x32xf32> to vector<8x32xf32>
    %85 = arith.addf %84, %74 : vector<8x32xf32>
    %86 = arith.negf %85 : vector<8x32xf32>
    %87 = math.exp %86 : vector<8x32xf32>
    %cst_49 = arith.constant 1.000000e+00 : f32
    %88 = vector.broadcast %cst_49 : f32 to vector<8x32xf32>
    %89 = arith.addf %88, %87 : vector<8x32xf32>
    %90 = arith.divf %88, %89 : vector<8x32xf32>
    %91 = vector.extract_strided_slice %22 {offsets = [8, 0], sizes = [8, 32], strides = [1, 1]} : vector<64x32xf32> to vector<8x32xf32>
    %92 = arith.mulf %83, %76 : vector<8x32xf32>
    %93 = arith.addf %91, %92 : vector<8x32xf32>
    %94 = math.tanh %93 : vector<8x32xf32>
    %cst_50 = arith.constant 1.000000e+00 : f32
    %95 = vector.broadcast %cst_50 : f32 to vector<8x32xf32>
    %96 = arith.subf %95, %90 : vector<8x32xf32>
    %97 = arith.mulf %96, %94 : vector<8x32xf32>
    %98 = arith.mulf %90, %70 : vector<8x32xf32>
    %99 = arith.addf %97, %98 : vector<8x32xf32>
    %cst_51 = arith.constant dense<0.000000e+00> : vector<8x32xf32>
    %100 = tpu.matmul %99, %36, %cst_51 {dimension_numbers = #tpu.dot_dimension_numbers<[1], [0], [0], [1], [0, 0, 1, 1], [], []>} : vector<8x32xf32>, vector<32x32xf32>, vector<8x32xf32> -> vector<8x32xf32>
    %101 = arith.addf %100, %26 : vector<8x32xf32>
    %cst_52 = arith.constant dense<0.000000e+00> : vector<8x32xf32>
    %102 = tpu.matmul %99, %38, %cst_52 {dimension_numbers = #tpu.dot_dimension_numbers<[1], [0], [0], [1], [0, 0, 1, 1], [], []>} : vector<8x32xf32>, vector<32x32xf32>, vector<8x32xf32> -> vector<8x32xf32>
    %103 = arith.addf %102, %30 : vector<8x32xf32>
    %cst_53 = arith.constant dense<0.000000e+00> : vector<8x32xf32>
    %104 = tpu.matmul %99, %40, %cst_53 {dimension_numbers = #tpu.dot_dimension_numbers<[1], [0], [0], [1], [0, 0, 1, 1], [], []>} : vector<8x32xf32>, vector<32x32xf32>, vector<8x32xf32> -> vector<8x32xf32>
    %105 = arith.addf %104, %34 : vector<8x32xf32>
    %106 = vector.extract_strided_slice %8 {offsets = [16, 0], sizes = [8, 32], strides = [1, 1]} : vector<64x32xf32> to vector<8x32xf32>
    %107 = arith.addf %106, %101 : vector<8x32xf32>
    %108 = arith.negf %107 : vector<8x32xf32>
    %109 = math.exp %108 : vector<8x32xf32>
    %cst_54 = arith.constant 1.000000e+00 : f32
    %110 = vector.broadcast %cst_54 : f32 to vector<8x32xf32>
    %111 = arith.addf %110, %109 : vector<8x32xf32>
    %112 = arith.divf %110, %111 : vector<8x32xf32>
    %113 = vector.extract_strided_slice %15 {offsets = [16, 0], sizes = [8, 32], strides = [1, 1]} : vector<64x32xf32> to vector<8x32xf32>
    %114 = arith.addf %113, %103 : vector<8x32xf32>
    %115 = arith.negf %114 : vector<8x32xf32>
    %116 = math.exp %115 : vector<8x32xf32>
    %cst_55 = arith.constant 1.000000e+00 : f32
    %117 = vector.broadcast %cst_55 : f32 to vector<8x32xf32>
    %118 = arith.addf %117, %116 : vector<8x32xf32>
    %119 = arith.divf %117, %118 : vector<8x32xf32>
    %120 = vector.extract_strided_slice %22 {offsets = [16, 0], sizes = [8, 32], strides = [1, 1]} : vector<64x32xf32> to vector<8x32xf32>
    %121 = arith.mulf %112, %105 : vector<8x32xf32>
    %122 = arith.addf %120, %121 : vector<8x32xf32>
    %123 = math.tanh %122 : vector<8x32xf32>
    %cst_56 = arith.constant 1.000000e+00 : f32
    %124 = vector.broadcast %cst_56 : f32 to vector<8x32xf32>
    %125 = arith.subf %124, %119 : vector<8x32xf32>
    %126 = arith.mulf %125, %123 : vector<8x32xf32>
    %127 = arith.mulf %119, %99 : vector<8x32xf32>
    %128 = arith.addf %126, %127 : vector<8x32xf32>
    %cst_57 = arith.constant dense<0.000000e+00> : vector<8x32xf32>
    %129 = tpu.matmul %128, %36, %cst_57 {dimension_numbers = #tpu.dot_dimension_numbers<[1], [0], [0], [1], [0, 0, 1, 1], [], []>} : vector<8x32xf32>, vector<32x32xf32>, vector<8x32xf32> -> vector<8x32xf32>
    %130 = arith.addf %129, %26 : vector<8x32xf32>
    %cst_58 = arith.constant dense<0.000000e+00> : vector<8x32xf32>
    %131 = tpu.matmul %128, %38, %cst_58 {dimension_numbers = #tpu.dot_dimension_numbers<[1], [0], [0], [1], [0, 0, 1, 1], [], []>} : vector<8x32xf32>, vector<32x32xf32>, vector<8x32xf32> -> vector<8x32xf32>
    %132 = arith.addf %131, %30 : vector<8x32xf32>
    %cst_59 = arith.constant dense<0.000000e+00> : vector<8x32xf32>
    %133 = tpu.matmul %128, %40, %cst_59 {dimension_numbers = #tpu.dot_dimension_numbers<[1], [0], [0], [1], [0, 0, 1, 1], [], []>} : vector<8x32xf32>, vector<32x32xf32>, vector<8x32xf32> -> vector<8x32xf32>
    %134 = arith.addf %133, %34 : vector<8x32xf32>
    %135 = vector.extract_strided_slice %8 {offsets = [24, 0], sizes = [8, 32], strides = [1, 1]} : vector<64x32xf32> to vector<8x32xf32>
    %136 = arith.addf %135, %130 : vector<8x32xf32>
    %137 = arith.negf %136 : vector<8x32xf32>
    %138 = math.exp %137 : vector<8x32xf32>
    %cst_60 = arith.constant 1.000000e+00 : f32
    %139 = vector.broadcast %cst_60 : f32 to vector<8x32xf32>
    %140 = arith.addf %139, %138 : vector<8x32xf32>
    %141 = arith.divf %139, %140 : vector<8x32xf32>
    %142 = vector.extract_strided_slice %15 {offsets = [24, 0], sizes = [8, 32], strides = [1, 1]} : vector<64x32xf32> to vector<8x32xf32>
    %143 = arith.addf %142, %132 : vector<8x32xf32>
    %144 = arith.negf %143 : vector<8x32xf32>
    %145 = math.exp %144 : vector<8x32xf32>
    %cst_61 = arith.constant 1.000000e+00 : f32
    %146 = vector.broadcast %cst_61 : f32 to vector<8x32xf32>
    %147 = arith.addf %146, %145 : vector<8x32xf32>
    %148 = arith.divf %146, %147 : vector<8x32xf32>
    %149 = vector.extract_strided_slice %22 {offsets = [24, 0], sizes = [8, 32], strides = [1, 1]} : vector<64x32xf32> to vector<8x32xf32>
    %150 = arith.mulf %141, %134 : vector<8x32xf32>
    %151 = arith.addf %149, %150 : vector<8x32xf32>
    %152 = math.tanh %151 : vector<8x32xf32>
    %cst_62 = arith.constant 1.000000e+00 : f32
    %153 = vector.broadcast %cst_62 : f32 to vector<8x32xf32>
    %154 = arith.subf %153, %148 : vector<8x32xf32>
    %155 = arith.mulf %154, %152 : vector<8x32xf32>
    %156 = arith.mulf %148, %128 : vector<8x32xf32>
    %157 = arith.addf %155, %156 : vector<8x32xf32>
    %cst_63 = arith.constant dense<0.000000e+00> : vector<8x32xf32>
    %158 = tpu.matmul %157, %36, %cst_63 {dimension_numbers = #tpu.dot_dimension_numbers<[1], [0], [0], [1], [0, 0, 1, 1], [], []>} : vector<8x32xf32>, vector<32x32xf32>, vector<8x32xf32> -> vector<8x32xf32>
    %159 = arith.addf %158, %26 : vector<8x32xf32>
    %cst_64 = arith.constant dense<0.000000e+00> : vector<8x32xf32>
    %160 = tpu.matmul %157, %38, %cst_64 {dimension_numbers = #tpu.dot_dimension_numbers<[1], [0], [0], [1], [0, 0, 1, 1], [], []>} : vector<8x32xf32>, vector<32x32xf32>, vector<8x32xf32> -> vector<8x32xf32>
    %161 = arith.addf %160, %30 : vector<8x32xf32>
    %cst_65 = arith.constant dense<0.000000e+00> : vector<8x32xf32>
    %162 = tpu.matmul %157, %40, %cst_65 {dimension_numbers = #tpu.dot_dimension_numbers<[1], [0], [0], [1], [0, 0, 1, 1], [], []>} : vector<8x32xf32>, vector<32x32xf32>, vector<8x32xf32> -> vector<8x32xf32>
    %163 = arith.addf %162, %34 : vector<8x32xf32>
    %164 = vector.extract_strided_slice %8 {offsets = [32, 0], sizes = [8, 32], strides = [1, 1]} : vector<64x32xf32> to vector<8x32xf32>
    %165 = arith.addf %164, %159 : vector<8x32xf32>
    %166 = arith.negf %165 : vector<8x32xf32>
    %167 = math.exp %166 : vector<8x32xf32>
    %cst_66 = arith.constant 1.000000e+00 : f32
    %168 = vector.broadcast %cst_66 : f32 to vector<8x32xf32>
    %169 = arith.addf %168, %167 : vector<8x32xf32>
    %170 = arith.divf %168, %169 : vector<8x32xf32>
    %171 = vector.extract_strided_slice %15 {offsets = [32, 0], sizes = [8, 32], strides = [1, 1]} : vector<64x32xf32> to vector<8x32xf32>
    %172 = arith.addf %171, %161 : vector<8x32xf32>
    %173 = arith.negf %172 : vector<8x32xf32>
    %174 = math.exp %173 : vector<8x32xf32>
    %cst_67 = arith.constant 1.000000e+00 : f32
    %175 = vector.broadcast %cst_67 : f32 to vector<8x32xf32>
    %176 = arith.addf %175, %174 : vector<8x32xf32>
    %177 = arith.divf %175, %176 : vector<8x32xf32>
    %178 = vector.extract_strided_slice %22 {offsets = [32, 0], sizes = [8, 32], strides = [1, 1]} : vector<64x32xf32> to vector<8x32xf32>
    %179 = arith.mulf %170, %163 : vector<8x32xf32>
    %180 = arith.addf %178, %179 : vector<8x32xf32>
    %181 = math.tanh %180 : vector<8x32xf32>
    %cst_68 = arith.constant 1.000000e+00 : f32
    %182 = vector.broadcast %cst_68 : f32 to vector<8x32xf32>
    %183 = arith.subf %182, %177 : vector<8x32xf32>
    %184 = arith.mulf %183, %181 : vector<8x32xf32>
    %185 = arith.mulf %177, %157 : vector<8x32xf32>
    %186 = arith.addf %184, %185 : vector<8x32xf32>
    %cst_69 = arith.constant dense<0.000000e+00> : vector<8x32xf32>
    %187 = tpu.matmul %186, %36, %cst_69 {dimension_numbers = #tpu.dot_dimension_numbers<[1], [0], [0], [1], [0, 0, 1, 1], [], []>} : vector<8x32xf32>, vector<32x32xf32>, vector<8x32xf32> -> vector<8x32xf32>
    %188 = arith.addf %187, %26 : vector<8x32xf32>
    %cst_70 = arith.constant dense<0.000000e+00> : vector<8x32xf32>
    %189 = tpu.matmul %186, %38, %cst_70 {dimension_numbers = #tpu.dot_dimension_numbers<[1], [0], [0], [1], [0, 0, 1, 1], [], []>} : vector<8x32xf32>, vector<32x32xf32>, vector<8x32xf32> -> vector<8x32xf32>
    %190 = arith.addf %189, %30 : vector<8x32xf32>
    %cst_71 = arith.constant dense<0.000000e+00> : vector<8x32xf32>
    %191 = tpu.matmul %186, %40, %cst_71 {dimension_numbers = #tpu.dot_dimension_numbers<[1], [0], [0], [1], [0, 0, 1, 1], [], []>} : vector<8x32xf32>, vector<32x32xf32>, vector<8x32xf32> -> vector<8x32xf32>
    %192 = arith.addf %191, %34 : vector<8x32xf32>
    %193 = vector.extract_strided_slice %8 {offsets = [40, 0], sizes = [8, 32], strides = [1, 1]} : vector<64x32xf32> to vector<8x32xf32>
    %194 = arith.addf %193, %188 : vector<8x32xf32>
    %195 = arith.negf %194 : vector<8x32xf32>
    %196 = math.exp %195 : vector<8x32xf32>
    %cst_72 = arith.constant 1.000000e+00 : f32
    %197 = vector.broadcast %cst_72 : f32 to vector<8x32xf32>
    %198 = arith.addf %197, %196 : vector<8x32xf32>
    %199 = arith.divf %197, %198 : vector<8x32xf32>
    %200 = vector.extract_strided_slice %15 {offsets = [40, 0], sizes = [8, 32], strides = [1, 1]} : vector<64x32xf32> to vector<8x32xf32>
    %201 = arith.addf %200, %190 : vector<8x32xf32>
    %202 = arith.negf %201 : vector<8x32xf32>
    %203 = math.exp %202 : vector<8x32xf32>
    %cst_73 = arith.constant 1.000000e+00 : f32
    %204 = vector.broadcast %cst_73 : f32 to vector<8x32xf32>
    %205 = arith.addf %204, %203 : vector<8x32xf32>
    %206 = arith.divf %204, %205 : vector<8x32xf32>
    %207 = vector.extract_strided_slice %22 {offsets = [40, 0], sizes = [8, 32], strides = [1, 1]} : vector<64x32xf32> to vector<8x32xf32>
    %208 = arith.mulf %199, %192 : vector<8x32xf32>
    %209 = arith.addf %207, %208 : vector<8x32xf32>
    %210 = math.tanh %209 : vector<8x32xf32>
    %cst_74 = arith.constant 1.000000e+00 : f32
    %211 = vector.broadcast %cst_74 : f32 to vector<8x32xf32>
    %212 = arith.subf %211, %206 : vector<8x32xf32>
    %213 = arith.mulf %212, %210 : vector<8x32xf32>
    %214 = arith.mulf %206, %186 : vector<8x32xf32>
    %215 = arith.addf %213, %214 : vector<8x32xf32>
    %cst_75 = arith.constant dense<0.000000e+00> : vector<8x32xf32>
    %216 = tpu.matmul %215, %36, %cst_75 {dimension_numbers = #tpu.dot_dimension_numbers<[1], [0], [0], [1], [0, 0, 1, 1], [], []>} : vector<8x32xf32>, vector<32x32xf32>, vector<8x32xf32> -> vector<8x32xf32>
    %217 = arith.addf %216, %26 : vector<8x32xf32>
    %cst_76 = arith.constant dense<0.000000e+00> : vector<8x32xf32>
    %218 = tpu.matmul %215, %38, %cst_76 {dimension_numbers = #tpu.dot_dimension_numbers<[1], [0], [0], [1], [0, 0, 1, 1], [], []>} : vector<8x32xf32>, vector<32x32xf32>, vector<8x32xf32> -> vector<8x32xf32>
    %219 = arith.addf %218, %30 : vector<8x32xf32>
    %cst_77 = arith.constant dense<0.000000e+00> : vector<8x32xf32>
    %220 = tpu.matmul %215, %40, %cst_77 {dimension_numbers = #tpu.dot_dimension_numbers<[1], [0], [0], [1], [0, 0, 1, 1], [], []>} : vector<8x32xf32>, vector<32x32xf32>, vector<8x32xf32> -> vector<8x32xf32>
    %221 = arith.addf %220, %34 : vector<8x32xf32>
    %222 = vector.extract_strided_slice %8 {offsets = [48, 0], sizes = [8, 32], strides = [1, 1]} : vector<64x32xf32> to vector<8x32xf32>
    %223 = arith.addf %222, %217 : vector<8x32xf32>
    %224 = arith.negf %223 : vector<8x32xf32>
    %225 = math.exp %224 : vector<8x32xf32>
    %cst_78 = arith.constant 1.000000e+00 : f32
    %226 = vector.broadcast %cst_78 : f32 to vector<8x32xf32>
    %227 = arith.addf %226, %225 : vector<8x32xf32>
    %228 = arith.divf %226, %227 : vector<8x32xf32>
    %229 = vector.extract_strided_slice %15 {offsets = [48, 0], sizes = [8, 32], strides = [1, 1]} : vector<64x32xf32> to vector<8x32xf32>
    %230 = arith.addf %229, %219 : vector<8x32xf32>
    %231 = arith.negf %230 : vector<8x32xf32>
    %232 = math.exp %231 : vector<8x32xf32>
    %cst_79 = arith.constant 1.000000e+00 : f32
    %233 = vector.broadcast %cst_79 : f32 to vector<8x32xf32>
    %234 = arith.addf %233, %232 : vector<8x32xf32>
    %235 = arith.divf %233, %234 : vector<8x32xf32>
    %236 = vector.extract_strided_slice %22 {offsets = [48, 0], sizes = [8, 32], strides = [1, 1]} : vector<64x32xf32> to vector<8x32xf32>
    %237 = arith.mulf %228, %221 : vector<8x32xf32>
    %238 = arith.addf %236, %237 : vector<8x32xf32>
    %239 = math.tanh %238 : vector<8x32xf32>
    %cst_80 = arith.constant 1.000000e+00 : f32
    %240 = vector.broadcast %cst_80 : f32 to vector<8x32xf32>
    %241 = arith.subf %240, %235 : vector<8x32xf32>
    %242 = arith.mulf %241, %239 : vector<8x32xf32>
    %243 = arith.mulf %235, %215 : vector<8x32xf32>
    %244 = arith.addf %242, %243 : vector<8x32xf32>
    %cst_81 = arith.constant dense<0.000000e+00> : vector<8x32xf32>
    %245 = tpu.matmul %244, %36, %cst_81 {dimension_numbers = #tpu.dot_dimension_numbers<[1], [0], [0], [1], [0, 0, 1, 1], [], []>} : vector<8x32xf32>, vector<32x32xf32>, vector<8x32xf32> -> vector<8x32xf32>
    %246 = arith.addf %245, %26 : vector<8x32xf32>
    %cst_82 = arith.constant dense<0.000000e+00> : vector<8x32xf32>
    %247 = tpu.matmul %244, %38, %cst_82 {dimension_numbers = #tpu.dot_dimension_numbers<[1], [0], [0], [1], [0, 0, 1, 1], [], []>} : vector<8x32xf32>, vector<32x32xf32>, vector<8x32xf32> -> vector<8x32xf32>
    %248 = arith.addf %247, %30 : vector<8x32xf32>
    %cst_83 = arith.constant dense<0.000000e+00> : vector<8x32xf32>
    %249 = tpu.matmul %244, %40, %cst_83 {dimension_numbers = #tpu.dot_dimension_numbers<[1], [0], [0], [1], [0, 0, 1, 1], [], []>} : vector<8x32xf32>, vector<32x32xf32>, vector<8x32xf32> -> vector<8x32xf32>
    %250 = arith.addf %249, %34 : vector<8x32xf32>
    %251 = vector.extract_strided_slice %8 {offsets = [56, 0], sizes = [8, 32], strides = [1, 1]} : vector<64x32xf32> to vector<8x32xf32>
    %252 = arith.addf %251, %246 : vector<8x32xf32>
    %253 = arith.negf %252 : vector<8x32xf32>
    %254 = math.exp %253 : vector<8x32xf32>
    %cst_84 = arith.constant 1.000000e+00 : f32
    %255 = vector.broadcast %cst_84 : f32 to vector<8x32xf32>
    %256 = arith.addf %255, %254 : vector<8x32xf32>
    %257 = arith.divf %255, %256 : vector<8x32xf32>
    %258 = vector.extract_strided_slice %15 {offsets = [56, 0], sizes = [8, 32], strides = [1, 1]} : vector<64x32xf32> to vector<8x32xf32>
    %259 = arith.addf %258, %248 : vector<8x32xf32>
    %260 = arith.negf %259 : vector<8x32xf32>
    %261 = math.exp %260 : vector<8x32xf32>
    %cst_85 = arith.constant 1.000000e+00 : f32
    %262 = vector.broadcast %cst_85 : f32 to vector<8x32xf32>
    %263 = arith.addf %262, %261 : vector<8x32xf32>
    %264 = arith.divf %262, %263 : vector<8x32xf32>
    %265 = vector.extract_strided_slice %22 {offsets = [56, 0], sizes = [8, 32], strides = [1, 1]} : vector<64x32xf32> to vector<8x32xf32>
    %266 = arith.mulf %257, %250 : vector<8x32xf32>
    %267 = arith.addf %265, %266 : vector<8x32xf32>
    %268 = math.tanh %267 : vector<8x32xf32>
    %cst_86 = arith.constant 1.000000e+00 : f32
    %269 = vector.broadcast %cst_86 : f32 to vector<8x32xf32>
    %270 = arith.subf %269, %264 : vector<8x32xf32>
    %271 = arith.mulf %270, %268 : vector<8x32xf32>
    %272 = arith.mulf %264, %244 : vector<8x32xf32>
    %273 = arith.addf %271, %272 : vector<8x32xf32>
    %c0_87 = arith.constant 0 : index
    %c0_88 = arith.constant 0 : index
    %274 = vector.load %arg6[%c0_87, %c0_88] : memref<32x128xf32, #tpu.memory_space<vmem>>, vector<32x128xf32>
    %cst_89 = arith.constant dense<0.000000e+00> : vector<8x128xf32>
    %275 = tpu.matmul %273, %274, %cst_89 {dimension_numbers = #tpu.dot_dimension_numbers<[1], [0], [0], [1], [0, 0, 1, 1], [], []>} : vector<8x32xf32>, vector<32x128xf32>, vector<8x128xf32> -> vector<8x128xf32>
    %c0_90 = arith.constant 0 : index
    %c0_91 = arith.constant 0 : index
    %276 = vector.load %arg7[%c0_90, %c0_91] : memref<8x128xf32, #tpu.memory_space<vmem>>, vector<8x128xf32>
    tpu.vector_store %arg7[%c0_90, %c0_91], %275 {strides = array<i32>} : memref<8x128xf32, #tpu.memory_space<vmem>>, vector<8x128xf32>,
    return
  }
  func.func @transform_0(%arg0: i32) -> (i32, i32, i32) {
    %c0_i32 = arith.constant 0 : i32
    %c0_i32_0 = arith.constant 0 : i32
    %c0_i32_1 = arith.constant 0 : i32
    %c0_i32_2 = arith.constant 0 : i32
    return %c0_i32, %c0_i32_0, %c0_i32_1 : i32, i32, i32
  }
  func.func @transform_1(%arg0: i32) -> (i32, i32, i32) {
    %c0_i32 = arith.constant 0 : i32
    %c0_i32_0 = arith.constant 0 : i32
    %c0_i32_1 = arith.constant 0 : i32
    %c0_i32_2 = arith.constant 0 : i32
    return %c0_i32, %c0_i32_0, %c0_i32_1 : i32, i32, i32
  }
  func.func @transform_2(%arg0: i32) -> (i32, i32, i32) {
    %c0_i32 = arith.constant 0 : i32
    %c0_i32_0 = arith.constant 0 : i32
    %c0_i32_1 = arith.constant 0 : i32
    %c0_i32_2 = arith.constant 0 : i32
    return %c0_i32, %c0_i32_0, %c0_i32_1 : i32, i32, i32
  }
  func.func @transform_3(%arg0: i32) -> (i32, i32, i32) {
    %c0_i32 = arith.constant 0 : i32
    %c0_i32_0 = arith.constant 0 : i32
    %c0_i32_1 = arith.constant 0 : i32
    %c0_i32_2 = arith.constant 0 : i32
    return %c0_i32, %c0_i32_0, %c0_i32_1 : i32, i32, i32
  }
  func.func @transform_4(%arg0: i32) -> (i32, i32, i32) {
    %c0_i32 = arith.constant 0 : i32
    %c0_i32_0 = arith.constant 0 : i32
    %c0_i32_1 = arith.constant 0 : i32
    %c0_i32_2 = arith.constant 0 : i32
    return %c0_i32, %c0_i32_0, %c0_i32_1 : i32, i32, i32
  }
  func.func @transform_5(%arg0: i32) -> (i32, i32) {
    %c0_i32 = arith.constant 0 : i32
    %c0_i32_0 = arith.constant 0 : i32
    %c0_i32_1 = arith.constant 0 : i32
    return %c0_i32, %c0_i32_0 : i32, i32
  }
  func.func @transform_6(%arg0: i32) -> (i32, i32) {
    %c0_i32 = arith.constant 0 : i32
    %c0_i32_0 = arith.constant 0 : i32
    %c0_i32_1 = arith.constant 0 : i32
    return %c0_i32, %c0_i32_0 : i32, i32
  }
}

</mosaic_0001>

<llo_original>
// kernel: tpu_custom_call.1
$region0: #{tpu_custom_call.1}
  #allocation0 [shape = 'u32[]', space=smem, size = 0x4, offset = 0x4, fixed_abs, tag = 'smem constant byte address 0x4 - core index']
  #allocation1 [shape = 'u32[72,128]{1,0:T(1,128)}', space=vmem, size = 0x9000, scoped, tag = 'internal scratch']
  %s0 = inlined_call_operand.hbm [shape: f32[8,8,16], index: 0, kind: input, shape index: {}]
  %s1 = inlined_call_operand.hbm [shape: f32[3,16,32], index: 1, kind: input, shape index: {}]
  %s2 = inlined_call_operand.hbm [shape: f32[3,32,32], index: 2, kind: input, shape index: {}]
  %s3 = inlined_call_operand.hbm [shape: f32[3,1,32], index: 3, kind: input, shape index: {}]
  %s4 = inlined_call_operand.vmem [shape: f32[3,1,32], index: 4, kind: input, shape index: {}]
  %s5 = inlined_call_operand.hbm [shape: f32[32,128], index: 5, kind: input, shape index: {}]
  %s6 = inlined_call_operand.hbm [shape: f32[8,128], index: 6, kind: output, shape index: {}]
  %s7 = sld [smem:[#allocation0]]
  $region54: #{tpu_custom_call.1} parent=0
    _
  %s9 = ssub.s32 1, %s7
  %s10 = scalar_select 0, %s9, %s7
  $region1: #{tpu_custom_call.1} parent=0
    #allocation2 [shape = 'u8[32768]{0}', space=vmem, size = 0x8000, scoped, tag = 'input window, operand 0, single buffered']
    #allocation3 [shape = 's32[1]{0}', space=sflag, size = 0x4, scoped, tag = 'scoped memory for tpu_custom_call.1']
    #allocation4 [shape = 's32[1]{0}', space=sflag, size = 0x4, scoped, tag = 'scoped memory for tpu_custom_call.1']
    #allocation5 [shape = 'u8[24576]{0}', space=vmem, size = 0x6000, scoped, tag = 'input window, operand 1, single buffered']
    #allocation6 [shape = 's32[1]{0}', space=sflag, size = 0x4, scoped, tag = 'scoped memory for tpu_custom_call.1']
    #allocation7 [shape = 'u8[49152]{0}', space=vmem, size = 0xc000, scoped, tag = 'input window, operand 2, single buffered']
    #allocation8 [shape = 'u8[1536]{0}', space=vmem, size = 0x800, scoped, tag = 'input window, operand 3, single buffered']
    #allocation9 [shape = 's32[1]{0}', space=sflag, size = 0x4, scoped, tag = 'scoped memory for tpu_custom_call.1']
    #allocation10 [shape = 'u8[16384]{0}', space=vmem, size = 0x4000, scoped, tag = 'input window, operand 5, single buffered']
    #allocation11 [shape = 'u8[4096]{0}', space=vmem, size = 0x1000, scoped, tag = 'output window, operand 0, single buffered']
    %11 = vsyncpa [#allocation3], 0
    %12 = vsyncpa [#allocation6], 0
    %13 = vsyncpa [#allocation9], 0
    %14 = vsyncpa [#allocation4], 0
    // Predicated region
    $region2: #{tpu_custom_call.1} parent=1 // pred_check
      _
    $region3: #{tpu_custom_call.1} parent=1 // pred_check_branch
      %16 = sbr.rel (0) target = $region5
    $region4: #{tpu_custom_call.1} parent=1 // pred_region
      %18 = vsyncadd [#allocation3], 0
      %s19 = sshll.u32 %s0, 4
      %s20 = int_to_ptr.hbm [resolvable:$true] %s19
      %s21 = sshll.u32 [#allocation2], 4
      %s22 = int_to_ptr.vmem [resolvable:$true] %s21
      %27 = dma.hbm_to_vmem [thread:$0]  %s20, 1024, %s22, [#allocation3], 128, 128, 8
    $region5: #{tpu_custom_call.1} parent=1 // pred_fallthru
      _
    // Predicated region
    $region6: #{tpu_custom_call.1} parent=1 // pred_check
      _
    $region7: #{tpu_custom_call.1} parent=1 // pred_check_branch
      %29 = sbr.rel (0) target = $region9
    $region8: #{tpu_custom_call.1} parent=1 // pred_region
      %31 = vsyncadd [#allocation6], 0
      %s32 = sshll.u32 %s1, 4
      %s33 = int_to_ptr.hbm [resolvable:$true] %s32
      %s34 = sshll.u32 [#allocation5], 4
      %s35 = int_to_ptr.vmem [resolvable:$true] %s34
      %40 = dma.hbm_to_vmem [thread:$0]  %s33, 768, %s35, [#allocation6], 128, 128, 8
    $region9: #{tpu_custom_call.1} parent=1 // pred_fallthru
      _
    // Predicated region
    $region10: #{tpu_custom_call.1} parent=1 // pred_check
      _
    $region11: #{tpu_custom_call.1} parent=1 // pred_check_branch
      %42 = sbr.rel (0) target = $region13
    $region12: #{tpu_custom_call.1} parent=1 // pred_region
      %44 = vsyncadd [#allocation6], 0
      %s45 = sshll.u32 %s2, 4
      %s46 = int_to_ptr.hbm [resolvable:$true] %s45
      %s47 = sshll.u32 [#allocation7], 4
      %s48 = int_to_ptr.vmem [resolvable:$true] %s47
      %53 = dma.hbm_to_vmem [thread:$0]  %s46, 1536, %s48, [#allocation6], 128, 128, 8
    $region13: #{tpu_custom_call.1} parent=1 // pred_fallthru
      _
    // Predicated region
    $region14: #{tpu_custom_call.1} parent=1 // pred_check
      _
    $region15: #{tpu_custom_call.1} parent=1 // pred_check_branch
      %55 = sbr.rel (0) target = $region17
    $region16: #{tpu_custom_call.1} parent=1 // pred_region
      %57 = vsyncadd [#allocation9], 0
      %s58 = sshll.u32 %s3, 4
      %s59 = int_to_ptr.hbm [resolvable:$true] %s58
      %s60 = sshll.u32 [#allocation8], 4
      %s61 = int_to_ptr.vmem [resolvable:$true] %s60
      %66 = dma.hbm_to_vmem [thread:$0]  %s59, 48, %s61, [#allocation9], 16, 16, 1
    $region17: #{tpu_custom_call.1} parent=1 // pred_fallthru
      _
    // Predicated region
    $region18: #{tpu_custom_call.1} parent=1 // pred_check
      _
    $region19: #{tpu_custom_call.1} parent=1 // pred_check_branch
      %68 = sbr.rel (0) target = $region21
    $region20: #{tpu_custom_call.1} parent=1 // pred_region
      _
    $region21: #{tpu_custom_call.1} parent=1 // pred_fallthru
      _
    // Predicated region
    $region22: #{tpu_custom_call.1} parent=1 // pred_check
      _
    $region23: #{tpu_custom_call.1} parent=1 // pred_check_branch
      %70 = sbr.rel (0) target = $region25
    $region24: #{tpu_custom_call.1} parent=1 // pred_region
      %72 = vsyncadd [#allocation9], 0
      %s73 = sshll.u32 %s5, 4
      %s74 = int_to_ptr.hbm [resolvable:$true] %s73
      %s75 = sshll.u32 [#allocation10], 4
      %s76 = int_to_ptr.vmem [resolvable:$true] %s75
      %81 = dma.hbm_to_vmem [thread:$0]  %s74, 512, %s76, [#allocation9], 128, 128, 8
    $region25: #{tpu_custom_call.1} parent=1 // pred_fallthru
      _
    // Predicated region
    $region26: #{tpu_custom_call.1} parent=1 // pred_check
      _
    $region27: #{tpu_custom_call.1} parent=1 // pred_check_branch
      %83 = sbr.rel (0) target = $region29
    $region28: #{tpu_custom_call.1} parent=1 // pred_region
      %85 = dma.done [#allocation3], 1024
    $region29: #{tpu_custom_call.1} parent=1 // pred_fallthru
      _
    // Predicated region
    $region30: #{tpu_custom_call.1} parent=1 // pred_check
      _
    $region31: #{tpu_custom_call.1} parent=1 // pred_check_branch
      %87 = sbr.rel (0) target = $region33
    $region32: #{tpu_custom_call.1} parent=1 // pred_region
      %89 = dma.done [#allocation6], 768
    $region33: #{tpu_custom_call.1} parent=1 // pred_fallthru
      _
    // Predicated region
    $region34: #{tpu_custom_call.1} parent=1 // pred_check
      _
    $region35: #{tpu_custom_call.1} parent=1 // pred_check_branch
      %91 = sbr.rel (0) target = $region37
    $region36: #{tpu_custom_call.1} parent=1 // pred_region
      %93 = dma.done [#allocation6], 1536
    $region37: #{tpu_custom_call.1} parent=1 // pred_fallthru
      _
    // Predicated region
    $region38: #{tpu_custom_call.1} parent=1 // pred_check
      _
    $region39: #{tpu_custom_call.1} parent=1 // pred_check_branch
      %95 = sbr.rel (0) target = $region41
    $region40: #{tpu_custom_call.1} parent=1 // pred_region
      %97 = dma.done [#allocation9], 48
    $region41: #{tpu_custom_call.1} parent=1 // pred_fallthru
      _
    // Predicated region
    $region42: #{tpu_custom_call.1} parent=1 // pred_check
      _
    $region43: #{tpu_custom_call.1} parent=1 // pred_check_branch
      %99 = sbr.rel (0) target = $region45
    $region44: #{tpu_custom_call.1} parent=1 // pred_region
      %101 = dma.done [#allocation9], 512
    $region45: #{tpu_custom_call.1} parent=1 // pred_fallthru
      _
    %v102 = vld [vmem:[#allocation2] sm:$0xff]
    %v103 = vld [vmem:[#allocation2 + $0x8] sm:$0xff]
    %v104 = vld [vmem:[#allocation2 + $0x10] sm:$0xff]
    %v105 = vld [vmem:[#allocation2 + $0x18] sm:$0xff]
    %v106 = vld [vmem:[#allocation2 + $0x20] sm:$0xff]
    %v107 = vld [vmem:[#allocation2 + $0x28] sm:$0xff]
    %v108 = vld [vmem:[#allocation2 + $0x30] sm:$0xff]
    %v109 = vld [vmem:[#allocation2 + $0x38] sm:$0xff]
    %v110 = vld [vmem:[#allocation5] sm:$0xff]
    %v111 = vld [vmem:[#allocation5 + $0x8] sm:$0xff]
    %v112 = vld [vmem:[#allocation8] sm:$0x1]
    %v114 = vperm.slane %v112, 0
    %vm116 = vcmask 130048
    %v118 = vsel %vm116, %v102, 0
    %v121 = vsel %vm116, %v103, 0
    %v124 = vsel %vm116, %v104, 0
    %v127 = vsel %vm116, %v105, 0
    %v130 = vsel %vm116, %v106, 0
    %v133 = vsel %vm116, %v107, 0
    %v136 = vsel %vm116, %v108, 0
    %v139 = vsel %vm116, %v109, 0
    %141 = vmatpush.msra.mxu0 0.0
    %142 = vmatpush.msra.mxu0 0.0
    %143 = vmatpush.msra.mxu0 0.0
    %144 = vmatpush.msra.mxu0 0.0
    %145 = vmatpush.msra.mxu0 0.0
    %146 = vmatpush.msra.mxu0 0.0
    %147 = vmatpush.msra.mxu0 0.0
    %148 = vmatpush.msra.mxu0 0.0
    %149 = vmatpush.msra.mxu0 0.0
    %150 = vmatpush.msra.mxu0 0.0
    %151 = vmatpush.msra.mxu0 0.0
    %152 = vmatpush.msra.mxu0 0.0
    %153 = vmatpush.msra.mxu0 0.0
    %154 = vmatpush.msra.mxu0 0.0
    %155 = vmatpush.msra.mxu0 %v111
    %156 = vmatpush.msra.mxu0 %v110
    %157 = vmatmul.f32.gmra.mxu0 %v118
    %v158 = vpop.f32.mrf.mxu0
    %v159 = vadd.f32 %v114, %v158
    %160 = vmatmul.f32.gmra.mxu0 %v121
    %v161 = vpop.f32.mrf.mxu0
    %v162 = vadd.f32 %v114, %v161
    %163 = vmatmul.f32.gmra.mxu0 %v124
    %v164 = vpop.f32.mrf.mxu0
    %v165 = vadd.f32 %v114, %v164
    %166 = vmatmul.f32.gmra.mxu0 %v127
    %v167 = vpop.f32.mrf.mxu0
    %v168 = vadd.f32 %v114, %v167
    %169 = vmatmul.f32.gmra.mxu0 %v130
    %v170 = vpop.f32.mrf.mxu0
    %v171 = vadd.f32 %v114, %v170
    %172 = vmatmul.f32.gmra.mxu0 %v133
    %v173 = vpop.f32.mrf.mxu0
    %v174 = vadd.f32 %v114, %v173
    %175 = vmatmul.f32.gmra.mxu0 %v136
    %v176 = vpop.f32.mrf.mxu0
    %v177 = vadd.f32 %v114, %v176
    %178 = vmatmul.f32.gmra.mxu0 %v139
    %v179 = vpop.f32.mrf.mxu0
    %v180 = vadd.f32 %v114, %v179
    %181 = vdwg.mxu0
    %s182 = scalar_lea.vmem [#allocation5], 16
    %v183 = vld [vmem:[%s182] sm:$0xff]
    %v184 = vld [vmem:[%s182 + $0x8] sm:$0xff]
    %s185 = scalar_lea.vmem [#allocation8], 1
    %v186 = vld [vmem:[%s185] sm:$0x1]
    %v188 = vperm.slane %v186, 0
    %190 = vmatpush.msra.mxu0 0.0
    %191 = vmatpush.msra.mxu0 0.0
    %192 = vmatpush.msra.mxu0 0.0
    %193 = vmatpush.msra.mxu0 0.0
    %194 = vmatpush.msra.mxu0 0.0
    %195 = vmatpush.msra.mxu0 0.0
    %196 = vmatpush.msra.mxu0 0.0
    %197 = vmatpush.msra.mxu0 0.0
    %198 = vmatpush.msra.mxu0 0.0
    %199 = vmatpush.msra.mxu0 0.0
    %200 = vmatpush.msra.mxu0 0.0
    %201 = vmatpush.msra.mxu0 0.0
    %202 = vmatpush.msra.mxu0 0.0
    %203 = vmatpush.msra.mxu0 0.0
    %204 = vmatpush.msra.mxu0 %v184
    %205 = vmatpush.msra.mxu0 %v183
    %206 = vmatmul.f32.gmra.mxu0 %v118
    %v207 = vpop.f32.mrf.mxu0
    %v208 = vadd.f32 %v188, %v207
    %209 = vmatmul.f32.gmra.mxu0 %v121
    %v210 = vpop.f32.mrf.mxu0
    %v211 = vadd.f32 %v188, %v210
    %212 = vmatmul.f32.gmra.mxu0 %v124
    %v213 = vpop.f32.mrf.mxu0
    %v214 = vadd.f32 %v188, %v213
    %215 = vmatmul.f32.gmra.mxu0 %v127
    %v216 = vpop.f32.mrf.mxu0
    %v217 = vadd.f32 %v188, %v216
    %218 = vmatmul.f32.gmra.mxu0 %v130
    %v219 = vpop.f32.mrf.mxu0
    %v220 = vadd.f32 %v188, %v219
    %221 = vmatmul.f32.gmra.mxu0 %v133
    %v222 = vpop.f32.mrf.mxu0
    %v223 = vadd.f32 %v188, %v222
    %224 = vmatmul.f32.gmra.mxu0 %v136
    %v225 = vpop.f32.mrf.mxu0
    %v226 = vadd.f32 %v188, %v225
    %227 = vmatmul.f32.gmra.mxu0 %v139
    %v228 = vpop.f32.mrf.mxu0
    %v229 = vadd.f32 %v188, %v228
    %230 = vdwg.mxu0
    %s231 = scalar_lea.vmem [#allocation5], 32
    %v232 = vld [vmem:[%s231] sm:$0xff]
    %v233 = vld [vmem:[%s231 + $0x8] sm:$0xff]
    %s234 = scalar_lea.vmem [#allocation8], 2
    %v235 = vld [vmem:[%s234] sm:$0x1]
    %v237 = vperm.slane %v235, 0
    %239 = vmatpush.msra.mxu0 0.0
    %240 = vmatpush.msra.mxu0 0.0
    %241 = vmatpush.msra.mxu0 0.0
    %242 = vmatpush.msra.mxu0 0.0
    %243 = vmatpush.msra.mxu0 0.0
    %244 = vmatpush.msra.mxu0 0.0
    %245 = vmatpush.msra.mxu0 0.0
    %246 = vmatpush.msra.mxu0 0.0
    %247 = vmatpush.msra.mxu0 0.0
    %248 = vmatpush.msra.mxu0 0.0
    %249 = vmatpush.msra.mxu0 0.0
    %250 = vmatpush.msra.mxu0 0.0
    %251 = vmatpush.msra.mxu0 0.0
    %252 = vmatpush.msra.mxu0 0.0
    %253 = vmatpush.msra.mxu0 %v233
    %254 = vmatpush.msra.mxu0 %v232
    %255 = vmatmul.f32.gmra.mxu0 %v118
    %v256 = vpop.f32.mrf.mxu0
    %v257 = vadd.f32 %v237, %v256
    %258 = vmatmul.f32.gmra.mxu0 %v121
    %v259 = vpop.f32.mrf.mxu0
    %v260 = vadd.f32 %v237, %v259
    %261 = vmatmul.f32.gmra.mxu0 %v124
    %v262 = vpop.f32.mrf.mxu0
    %v263 = vadd.f32 %v237, %v262
    %264 = vmatmul.f32.gmra.mxu0 %v127
    %v265 = vpop.f32.mrf.mxu0
    %v266 = vadd.f32 %v237, %v265
    %267 = vmatmul.f32.gmra.mxu0 %v130
    %v268 = vpop.f32.mrf.mxu0
    %v269 = vadd.f32 %v237, %v268
    %270 = vmatmul.f32.gmra.mxu0 %v133
    %v271 = vpop.f32.mrf.mxu0
    %v272 = vadd.f32 %v237, %v271
    %273 = vmatmul.f32.gmra.mxu0 %v136
    %v274 = vpop.f32.mrf.mxu0
    %v275 = vadd.f32 %v237, %v274
    %276 = vmatmul.f32.gmra.mxu0 %v139
    %v277 = vpop.f32.mrf.mxu0
    %v278 = vadd.f32 %v237, %v277
    %279 = vdwg.mxu0
    %v280 = vld [vmem:[%s4] sm:$0x1]
    %v282 = vperm.slane %v280, 0
    %s284 = scalar_lea.vmem %s4, 1
    %v285 = vld [vmem:[%s284] sm:$0x1]
    %v287 = vperm.slane %v285, 0
    %s289 = scalar_lea.vmem %s4, 2
    %v290 = vld [vmem:[%s289] sm:$0x1]
    %v292 = vperm.slane %v290, 0
    %v294 = vld [vmem:[#allocation7] sm:$0xff]
    %v295 = vld [vmem:[#allocation7 + $0x8] sm:$0xff]
    %v296 = vld [vmem:[#allocation7 + $0x10] sm:$0xff]
    %v297 = vld [vmem:[#allocation7 + $0x18] sm:$0xff]
    %s298 = scalar_lea.vmem [#allocation7], 32
    %v299 = vld [vmem:[%s298] sm:$0xff]
    %v300 = vld [vmem:[%s298 + $0x8] sm:$0xff]
    %v301 = vld [vmem:[%s298 + $0x10] sm:$0xff]
    %v302 = vld [vmem:[%s298 + $0x18] sm:$0xff]
    %s303 = scalar_lea.vmem [#allocation7], 64
    %v304 = vld [vmem:[%s303] sm:$0xff]
    %v305 = vld [vmem:[%s303 + $0x8] sm:$0xff]
    %v306 = vld [vmem:[%s303 + $0x10] sm:$0xff]
    %v307 = vld [vmem:[%s303 + $0x18] sm:$0xff]
    %vm308 = vcmask 261120
    %v310 = vsel %vm308, 0.0, 0
    %312 = vmatpush.msra.mxu0 0.0
    %313 = vmatpush.msra.mxu0 0.0
    %314 = vmatpush.msra.mxu0 0.0
    %315 = vmatpush.msra.mxu0 0.0
    %316 = vmatpush.msra.mxu0 0.0
    %317 = vmatpush.msra.mxu0 0.0
    %318 = vmatpush.msra.mxu0 0.0
    %319 = vmatpush.msra.mxu0 0.0
    %320 = vmatpush.msra.mxu0 0.0
    %321 = vmatpush.msra.mxu0 0.0
    %322 = vmatpush.msra.mxu0 0.0
    %323 = vmatpush.msra.mxu0 0.0
    %324 = vmatpush.msra.mxu0 %v297
    %325 = vmatpush.msra.mxu0 %v296
    %326 = vmatpush.msra.mxu0 %v295
    %327 = vmatpush.msra.mxu0 %v294
    %328 = vmatmul.f32.gmra.mxu0 %v310
    %v329 = vpop.f32.mrf.mxu0
    %v330 = vadd.f32 %v282, %v329
    %331 = vdwg.mxu0
    %332 = vmatpush.msra.mxu0 0.0
    %333 = vmatpush.msra.mxu0 0.0
    %334 = vmatpush.msra.mxu0 0.0
    %335 = vmatpush.msra.mxu0 0.0
    %336 = vmatpush.msra.mxu0 0.0
    %337 = vmatpush.msra.mxu0 0.0
    %338 = vmatpush.msra.mxu0 0.0
    %339 = vmatpush.msra.mxu0 0.0
    %340 = vmatpush.msra.mxu0 0.0
    %341 = vmatpush.msra.mxu0 0.0
    %342 = vmatpush.msra.mxu0 0.0
    %343 = vmatpush.msra.mxu0 0.0
    %344 = vmatpush.msra.mxu0 %v302
    %345 = vmatpush.msra.mxu0 %v301
    %346 = vmatpush.msra.mxu0 %v300
    %347 = vmatpush.msra.mxu0 %v299
    %348 = vmatmul.f32.gmra.mxu0 %v310
    %v349 = vpop.f32.mrf.mxu0
    %v350 = vadd.f32 %v287, %v349
    %351 = vdwg.mxu0
    %352 = vmatpush.msra.mxu0 0.0
    %353 = vmatpush.msra.mxu0 0.0
    %354 = vmatpush.msra.mxu0 0.0
    %355 = vmatpush.msra.mxu0 0.0
    %356 = vmatpush.msra.mxu0 0.0
    %357 = vmatpush.msra.mxu0 0.0
    %358 = vmatpush.msra.mxu0 0.0
    %359 = vmatpush.msra.mxu0 0.0
    %360 = vmatpush.msra.mxu0 0.0
    %361 = vmatpush.msra.mxu0 0.0
    %362 = vmatpush.msra.mxu0 0.0
    %363 = vmatpush.msra.mxu0 0.0
    %364 = vmatpush.msra.mxu0 %v307
    %365 = vmatpush.msra.mxu0 %v306
    %366 = vmatpush.msra.mxu0 %v305
    %367 = vmatpush.msra.mxu0 %v304
    %368 = vmatmul.f32.gmra.mxu0 %v310
    %v369 = vpop.f32.mrf.mxu0
    %v370 = vadd.f32 %v292, %v369
    %371 = vdwg.mxu0
    %v372 = vadd.f32 %v159, %v330
    %v373 = vxor.u32 %v372, 2147483648
    %v374 = vmul.f32 %v373, 1.442695
    %v375 = vpow.pop %v374
    %v376 = vadd.f32 %v375, 1.0
    %v377 = vrcp.pop %v376
    %v378 = vmul.f32 %v376, %v377
    %v379 = vsub.f32 1.0, %v378
    %v380 = vmul.f32 %v377, %v379
    %v381 = vadd.f32 %v377, %v380
    %vm382 = vweird.f32 %v376
    %vm383 = vweird.f32 %v377
    %vm384 = vmor %vm382, %vm383
    %v385 = vsel %vm384, %v377, %v381
    %v386 = vand.u32 2147483647, %v376
    %vm387 = vcmp.eq.f32.partialorder %v386, 8.507059e+37
    %v388 = vand.u32 %v376, 2147483648
    %v389 = vor.u32 1.1754944e-38, %v388
    %v390 = vsel %vm387, %v389, %v385
    %v391 = vmul.f32 1.0, %v390
    %v392 = vadd.f32 %v208, %v350
    %v393 = vxor.u32 %v392, 2147483648
    %v394 = vmul.f32 %v393, 1.442695
    %v395 = vpow.pop %v394
    %v396 = vadd.f32 %v395, 1.0
    %v397 = vrcp.pop %v396
    %v398 = vmul.f32 %v396, %v397
    %v399 = vsub.f32 1.0, %v398
    %v400 = vmul.f32 %v397, %v399
    %v401 = vadd.f32 %v397, %v400
    %vm402 = vweird.f32 %v396
    %vm403 = vweird.f32 %v397
    %vm404 = vmor %vm402, %vm403
    %v405 = vsel %vm404, %v397, %v401
    %v406 = vand.u32 2147483647, %v396
    %vm407 = vcmp.eq.f32.partialorder %v406, 8.507059e+37
    %v408 = vand.u32 %v396, 2147483648
    %v409 = vor.u32 1.1754944e-38, %v408
    %v410 = vsel %vm407, %v409, %v405
    %v411 = vmul.f32 1.0, %v410
    %v412 = vmul.f32 %v391, %v370
    %v413 = vadd.f32 %v257, %v412
    %v414 = vtanh.pop %v413
    %v415 = vsub.f32 1.0, %v411
    %v416 = vmul.f32 %v415, %v414
    %v417 = vmul.f32 %v411, 0.0
    %v418 = vadd.f32 %v416, %v417
    %v420 = vsel %vm308, %v418, 0
    %422 = vmatpush.msra.mxu0 0.0
    %423 = vmatpush.msra.mxu0 0.0
    %424 = vmatpush.msra.mxu0 0.0
    %425 = vmatpush.msra.mxu0 0.0
    %426 = vmatpush.msra.mxu0 0.0
    %427 = vmatpush.msra.mxu0 0.0
    %428 = vmatpush.msra.mxu0 0.0
    %429 = vmatpush.msra.mxu0 0.0
    %430 = vmatpush.msra.mxu0 0.0
    %431 = vmatpush.msra.mxu0 0.0
    %432 = vmatpush.msra.mxu0 0.0
    %433 = vmatpush.msra.mxu0 0.0
    %434 = vmatpush.msra.mxu0 %v297
    %435 = vmatpush.msra.mxu0 %v296
    %436 = vmatpush.msra.mxu0 %v295
    %437 = vmatpush.msra.mxu0 %v294
    %438 = vmatmul.f32.gmra.mxu0 %v420
    %v439 = vpop.f32.mrf.mxu0
    %v440 = vadd.f32 %v282, %v439
    %441 = vdwg.mxu0
    %442 = vmatpush.msra.mxu0 0.0
    %443 = vmatpush.msra.mxu0 0.0
    %444 = vmatpush.msra.mxu0 0.0
    %445 = vmatpush.msra.mxu0 0.0
    %446 = vmatpush.msra.mxu0 0.0
    %447 = vmatpush.msra.mxu0 0.0
    %448 = vmatpush.msra.mxu0 0.0
    %449 = vmatpush.msra.mxu0 0.0
    %450 = vmatpush.msra.mxu0 0.0
    %451 = vmatpush.msra.mxu0 0.0
    %452 = vmatpush.msra.mxu0 0.0
    %453 = vmatpush.msra.mxu0 0.0
    %454 = vmatpush.msra.mxu0 %v302
    %455 = vmatpush.msra.mxu0 %v301
    %456 = vmatpush.msra.mxu0 %v300
    %457 = vmatpush.msra.mxu0 %v299
    %458 = vmatmul.f32.gmra.mxu0 %v420
    %v459 = vpop.f32.mrf.mxu0
    %v460 = vadd.f32 %v287, %v459
    %461 = vdwg.mxu0
    %462 = vmatpush.msra.mxu0 0.0
    %463 = vmatpush.msra.mxu0 0.0
    %464 = vmatpush.msra.mxu0 0.0
    %465 = vmatpush.msra.mxu0 0.0
    %466 = vmatpush.msra.mxu0 0.0
    %467 = vmatpush.msra.mxu0 0.0
    %468 = vmatpush.msra.mxu0 0.0
    %469 = vmatpush.msra.mxu0 0.0
    %470 = vmatpush.msra.mxu0 0.0
    %471 = vmatpush.msra.mxu0 0.0
    %472 = vmatpush.msra.mxu0 0.0
    %473 = vmatpush.msra.mxu0 0.0
    %474 = vmatpush.msra.mxu0 %v307
    %475 = vmatpush.msra.mxu0 %v306
    %476 = vmatpush.msra.mxu0 %v305
    %477 = vmatpush.msra.mxu0 %v304
    %478 = vmatmul.f32.gmra.mxu0 %v420
    %v479 = vpop.f32.mrf.mxu0
    %v480 = vadd.f32 %v292, %v479
    %481 = vdwg.mxu0
    %v482 = vadd.f32 %v162, %v440
    %v483 = vxor.u32 %v482, 2147483648
    %v484 = vmul.f32 %v483, 1.442695
    %v485 = vpow.pop %v484
    %v486 = vadd.f32 %v485, 1.0
    %v487 = vrcp.pop %v486
    %v488 = vmul.f32 %v486, %v487
    %v489 = vsub.f32 1.0, %v488
    %v490 = vmul.f32 %v487, %v489
    %v491 = vadd.f32 %v487, %v490
    %vm492 = vweird.f32 %v486
    %vm493 = vweird.f32 %v487
    %vm494 = vmor %vm492, %vm493
    %v495 = vsel %vm494, %v487, %v491
    %v496 = vand.u32 2147483647, %v486
    %vm497 = vcmp.eq.f32.partialorder %v496, 8.507059e+37
    %v498 = vand.u32 %v486, 2147483648
    %v499 = vor.u32 1.1754944e-38, %v498
    %v500 = vsel %vm497, %v499, %v495
    %v501 = vmul.f32 1.0, %v500
    %v502 = vadd.f32 %v211, %v460
    %v503 = vxor.u32 %v502, 2147483648
    %v504 = vmul.f32 %v503, 1.442695
    %v505 = vpow.pop %v504
    %v506 = vadd.f32 %v505, 1.0
    %v507 = vrcp.pop %v506
    %v508 = vmul.f32 %v506, %v507
    %v509 = vsub.f32 1.0, %v508
    %v510 = vmul.f32 %v507, %v509
    %v511 = vadd.f32 %v507, %v510
    %vm512 = vweird.f32 %v506
    %vm513 = vweird.f32 %v507
    %vm514 = vmor %vm512, %vm513
    %v515 = vsel %vm514, %v507, %v511
    %v516 = vand.u32 2147483647, %v506
    %vm517 = vcmp.eq.f32.partialorder %v516, 8.507059e+37
    %v518 = vand.u32 %v506, 2147483648
    %v519 = vor.u32 1.1754944e-38, %v518
    %v520 = vsel %vm517, %v519, %v515
    %v521 = vmul.f32 1.0, %v520
    %v522 = vmul.f32 %v501, %v480
    %v523 = vadd.f32 %v260, %v522
    %v524 = vtanh.pop %v523
    %v525 = vsub.f32 1.0, %v521
    %v526 = vmul.f32 %v525, %v524
    %v527 = vmul.f32 %v521, %v418
    %v528 = vadd.f32 %v526, %v527
    %v530 = vsel %vm308, %v528, 0
    %532 = vmatpush.msra.mxu0 0.0
    %533 = vmatpush.msra.mxu0 0.0
    %534 = vmatpush.msra.mxu0 0.0
    %535 = vmatpush.msra.mxu0 0.0
    %536 = vmatpush.msra.mxu0 0.0
    %537 = vmatpush.msra.mxu0 0.0
    %538 = vmatpush.msra.mxu0 0.0
    %539 = vmatpush.msra.mxu0 0.0
    %540 = vmatpush.msra.mxu0 0.0
    %541 = vmatpush.msra.mxu0 0.0
    %542 = vmatpush.msra.mxu0 0.0
    %543 = vmatpush.msra.mxu0 0.0
    %544 = vmatpush.msra.mxu0 %v297
    %545 = vmatpush.msra.mxu0 %v296
    %546 = vmatpush.msra.mxu0 %v295
    %547 = vmatpush.msra.mxu0 %v294
    %548 = vmatmul.f32.gmra.mxu0 %v530
    %v549 = vpop.f32.mrf.mxu0
    %v550 = vadd.f32 %v282, %v549
    %551 = vdwg.mxu0
    %552 = vmatpush.msra.mxu0 0.0
    %553 = vmatpush.msra.mxu0 0.0
    %554 = vmatpush.msra.mxu0 0.0
    %555 = vmatpush.msra.mxu0 0.0
    %556 = vmatpush.msra.mxu0 0.0
    %557 = vmatpush.msra.mxu0 0.0
    %558 = vmatpush.msra.mxu0 0.0
    %559 = vmatpush.msra.mxu0 0.0
    %560 = vmatpush.msra.mxu0 0.0
    %561 = vmatpush.msra.mxu0 0.0
    %562 = vmatpush.msra.mxu0 0.0
    %563 = vmatpush.msra.mxu0 0.0
    %564 = vmatpush.msra.mxu0 %v302
    %565 = vmatpush.msra.mxu0 %v301
    %566 = vmatpush.msra.mxu0 %v300
    %567 = vmatpush.msra.mxu0 %v299
    %568 = vmatmul.f32.gmra.mxu0 %v530
    %v569 = vpop.f32.mrf.mxu0
    %v570 = vadd.f32 %v287, %v569
    %571 = vdwg.mxu0
    %572 = vmatpush.msra.mxu0 0.0
    %573 = vmatpush.msra.mxu0 0.0
    %574 = vmatpush.msra.mxu0 0.0
    %575 = vmatpush.msra.mxu0 0.0
    %576 = vmatpush.msra.mxu0 0.0
    %577 = vmatpush.msra.mxu0 0.0
    %578 = vmatpush.msra.mxu0 0.0
    %579 = vmatpush.msra.mxu0 0.0
    %580 = vmatpush.msra.mxu0 0.0
    %581 = vmatpush.msra.mxu0 0.0
    %582 = vmatpush.msra.mxu0 0.0
    %583 = vmatpush.msra.mxu0 0.0
    %584 = vmatpush.msra.mxu0 %v307
    %585 = vmatpush.msra.mxu0 %v306
    %586 = vmatpush.msra.mxu0 %v305
    %587 = vmatpush.msra.mxu0 %v304
    %588 = vmatmul.f32.gmra.mxu0 %v530
    %v589 = vpop.f32.mrf.mxu0
    %v590 = vadd.f32 %v292, %v589
    %591 = vdwg.mxu0
    %v592 = vadd.f32 %v165, %v550
    %v593 = vxor.u32 %v592, 2147483648
    %v594 = vmul.f32 %v593, 1.442695
    %v595 = vpow.pop %v594
    %v596 = vadd.f32 %v595, 1.0
    %v597 = vrcp.pop %v596
    %v598 = vmul.f32 %v596, %v597
    %v599 = vsub.f32 1.0, %v598
    %v600 = vmul.f32 %v597, %v599
    %v601 = vadd.f32 %v597, %v600
    %vm602 = vweird.f32 %v596
    %vm603 = vweird.f32 %v597
    %vm604 = vmor %vm602, %vm603
    %v605 = vsel %vm604, %v597, %v601
    %v606 = vand.u32 2147483647, %v596
    %vm607 = vcmp.eq.f32.partialorder %v606, 8.507059e+37
    %v608 = vand.u32 %v596, 2147483648
    %v609 = vor.u32 1.1754944e-38, %v608
    %v610 = vsel %vm607, %v609, %v605
    %v611 = vmul.f32 1.0, %v610
    %v612 = vadd.f32 %v214, %v570
    %v613 = vxor.u32 %v612, 2147483648
    %v614 = vmul.f32 %v613, 1.442695
    %v615 = vpow.pop %v614
    %v616 = vadd.f32 %v615, 1.0
    %v617 = vrcp.pop %v616
    %v618 = vmul.f32 %v616, %v617
    %v619 = vsub.f32 1.0, %v618
    %v620 = vmul.f32 %v617, %v619
    %v621 = vadd.f32 %v617, %v620
    %vm622 = vweird.f32 %v616
    %vm623 = vweird.f32 %v617
    %vm624 = vmor %vm622, %vm623
    %v625 = vsel %vm624, %v617, %v621
    %v626 = vand.u32 2147483647, %v616
    %vm627 = vcmp.eq.f32.partialorder %v626, 8.507059e+37
    %v628 = vand.u32 %v616, 2147483648
    %v629 = vor.u32 1.1754944e-38, %v628
    %v630 = vsel %vm627, %v629, %v625
    %v631 = vmul.f32 1.0, %v630
    %v632 = vmul.f32 %v611, %v590
    %v633 = vadd.f32 %v263, %v632
    %v634 = vtanh.pop %v633
    %v635 = vsub.f32 1.0, %v631
    %v636 = vmul.f32 %v635, %v634
    %v637 = vmul.f32 %v631, %v528
    %v638 = vadd.f32 %v636, %v637
    %v640 = vsel %vm308, %v638, 0
    %642 = vmatpush.msra.mxu0 0.0
    %643 = vmatpush.msra.mxu0 0.0
    %644 = vmatpush.msra.mxu0 0.0
    %645 = vmatpush.msra.mxu0 0.0
    %646 = vmatpush.msra.mxu0 0.0
    %647 = vmatpush.msra.mxu0 0.0
    %648 = vmatpush.msra.mxu0 0.0
    %649 = vmatpush.msra.mxu0 0.0
    %650 = vmatpush.msra.mxu0 0.0
    %651 = vmatpush.msra.mxu0 0.0
    %652 = vmatpush.msra.mxu0 0.0
    %653 = vmatpush.msra.mxu0 0.0
    %654 = vmatpush.msra.mxu0 %v297
    %655 = vmatpush.msra.mxu0 %v296
    %656 = vmatpush.msra.mxu0 %v295
    %657 = vmatpush.msra.mxu0 %v294
    %658 = vmatmul.f32.gmra.mxu0 %v640
    %v659 = vpop.f32.mrf.mxu0
    %v660 = vadd.f32 %v282, %v659
    %661 = vdwg.mxu0
    %662 = vmatpush.msra.mxu0 0.0
    %663 = vmatpush.msra.mxu0 0.0
    %664 = vmatpush.msra.mxu0 0.0
    %665 = vmatpush.msra.mxu0 0.0
    %666 = vmatpush.msra.mxu0 0.0
    %667 = vmatpush.msra.mxu0 0.0
    %668 = vmatpush.msra.mxu0 0.0
    %669 = vmatpush.msra.mxu0 0.0
    %670 = vmatpush.msra.mxu0 0.0
    %671 = vmatpush.msra.mxu0 0.0
    %672 = vmatpush.msra.mxu0 0.0
    %673 = vmatpush.msra.mxu0 0.0
    %674 = vmatpush.msra.mxu0 %v302
    %675 = vmatpush.msra.mxu0 %v301
    %676 = vmatpush.msra.mxu0 %v300
    %677 = vmatpush.msra.mxu0 %v299
    %678 = vmatmul.f32.gmra.mxu0 %v640
    %v679 = vpop.f32.mrf.mxu0
    %v680 = vadd.f32 %v287, %v679
    %681 = vdwg.mxu0
    %682 = vmatpush.msra.mxu0 0.0
    %683 = vmatpush.msra.mxu0 0.0
    %684 = vmatpush.msra.mxu0 0.0
    %685 = vmatpush.msra.mxu0 0.0
    %686 = vmatpush.msra.mxu0 0.0
    %687 = vmatpush.msra.mxu0 0.0
    %688 = vmatpush.msra.mxu0 0.0
    %689 = vmatpush.msra.mxu0 0.0
    %690 = vmatpush.msra.mxu0 0.0
    %691 = vmatpush.msra.mxu0 0.0
    %692 = vmatpush.msra.mxu0 0.0
    %693 = vmatpush.msra.mxu0 0.0
    %694 = vmatpush.msra.mxu0 %v307
    %695 = vmatpush.msra.mxu0 %v306
    %696 = vmatpush.msra.mxu0 %v305
    %697 = vmatpush.msra.mxu0 %v304
    %698 = vmatmul.f32.gmra.mxu0 %v640
    %v699 = vpop.f32.mrf.mxu0
    %v700 = vadd.f32 %v292, %v699
    %701 = vdwg.mxu0
    %v702 = vadd.f32 %v168, %v660
    %v703 = vxor.u32 %v702, 2147483648
    %v704 = vmul.f32 %v703, 1.442695
    %v705 = vpow.pop %v704
    %v706 = vadd.f32 %v705, 1.0
    %v707 = vrcp.pop %v706
    %v708 = vmul.f32 %v706, %v707
    %v709 = vsub.f32 1.0, %v708
    %v710 = vmul.f32 %v707, %v709
    %v711 = vadd.f32 %v707, %v710
    %vm712 = vweird.f32 %v706
    %vm713 = vweird.f32 %v707
    %vm714 = vmor %vm712, %vm713
    %v715 = vsel %vm714, %v707, %v711
    %v716 = vand.u32 2147483647, %v706
    %vm717 = vcmp.eq.f32.partialorder %v716, 8.507059e+37
    %v718 = vand.u32 %v706, 2147483648
    %v719 = vor.u32 1.1754944e-38, %v718
    %v720 = vsel %vm717, %v719, %v715
    %v721 = vmul.f32 1.0, %v720
    %v722 = vadd.f32 %v217, %v680
    %v723 = vxor.u32 %v722, 2147483648
    %v724 = vmul.f32 %v723, 1.442695
    %v725 = vpow.pop %v724
    %v726 = vadd.f32 %v725, 1.0
    %v727 = vrcp.pop %v726
    %v728 = vmul.f32 %v726, %v727
    %v729 = vsub.f32 1.0, %v728
    %v730 = vmul.f32 %v727, %v729
    %v731 = vadd.f32 %v727, %v730
    %vm732 = vweird.f32 %v726
    %vm733 = vweird.f32 %v727
    %vm734 = vmor %vm732, %vm733
    %v735 = vsel %vm734, %v727, %v731
    %v736 = vand.u32 2147483647, %v726
    %vm737 = vcmp.eq.f32.partialorder %v736, 8.507059e+37
    %v738 = vand.u32 %v726, 2147483648
    %v739 = vor.u32 1.1754944e-38, %v738
    %v740 = vsel %vm737, %v739, %v735
    %v741 = vmul.f32 1.0, %v740
    %v742 = vmul.f32 %v721, %v700
    %v743 = vadd.f32 %v266, %v742
    %v744 = vtanh.pop %v743
    %v745 = vsub.f32 1.0, %v741
    %v746 = vmul.f32 %v745, %v744
    %v747 = vmul.f32 %v741, %v638
    %v748 = vadd.f32 %v746, %v747
    %v750 = vsel %vm308, %v748, 0
    %752 = vmatpush.msra.mxu0 0.0
    %753 = vmatpush.msra.mxu0 0.0
    %754 = vmatpush.msra.mxu0 0.0
    %755 = vmatpush.msra.mxu0 0.0
    %756 = vmatpush.msra.mxu0 0.0
    %757 = vmatpush.msra.mxu0 0.0
    %758 = vmatpush.msra.mxu0 0.0
    %759 = vmatpush.msra.mxu0 0.0
    %760 = vmatpush.msra.mxu0 0.0
    %761 = vmatpush.msra.mxu0 0.0
    %762 = vmatpush.msra.mxu0 0.0
    %763 = vmatpush.msra.mxu0 0.0
    %764 = vmatpush.msra.mxu0 %v297
    %765 = vmatpush.msra.mxu0 %v296
    %766 = vmatpush.msra.mxu0 %v295
    %767 = vmatpush.msra.mxu0 %v294
    %768 = vmatmul.f32.gmra.mxu0 %v750
    %v769 = vpop.f32.mrf.mxu0
    %v770 = vadd.f32 %v282, %v769
    %771 = vdwg.mxu0
    %772 = vmatpush.msra.mxu0 0.0
    %773 = vmatpush.msra.mxu0 0.0
    %774 = vmatpush.msra.mxu0 0.0
    %775 = vmatpush.msra.mxu0 0.0
    %776 = vmatpush.msra.mxu0 0.0
    %777 = vmatpush.msra.mxu0 0.0
    %778 = vmatpush.msra.mxu0 0.0
    %779 = vmatpush.msra.mxu0 0.0
    %780 = vmatpush.msra.mxu0 0.0
    %781 = vmatpush.msra.mxu0 0.0
    %782 = vmatpush.msra.mxu0 0.0
    %783 = vmatpush.msra.mxu0 0.0
    %784 = vmatpush.msra.mxu0 %v302
    %785 = vmatpush.msra.mxu0 %v301
    %786 = vmatpush.msra.mxu0 %v300
    %787 = vmatpush.msra.mxu0 %v299
    %788 = vmatmul.f32.gmra.mxu0 %v750
    %v789 = vpop.f32.mrf.mxu0
    %v790 = vadd.f32 %v287, %v789
    %791 = vdwg.mxu0
    %792 = vmatpush.msra.mxu0 0.0
    %793 = vmatpush.msra.mxu0 0.0
    %794 = vmatpush.msra.mxu0 0.0
    %795 = vmatpush.msra.mxu0 0.0
    %796 = vmatpush.msra.mxu0 0.0
    %797 = vmatpush.msra.mxu0 0.0
    %798 = vmatpush.msra.mxu0 0.0
    %799 = vmatpush.msra.mxu0 0.0
    %800 = vmatpush.msra.mxu0 0.0
    %801 = vmatpush.msra.mxu0 0.0
    %802 = vmatpush.msra.mxu0 0.0
    %803 = vmatpush.msra.mxu0 0.0
    %804 = vmatpush.msra.mxu0 %v307
    %805 = vmatpush.msra.mxu0 %v306
    %806 = vmatpush.msra.mxu0 %v305
    %807 = vmatpush.msra.mxu0 %v304
    %808 = vmatmul.f32.gmra.mxu0 %v750
    %v809 = vpop.f32.mrf.mxu0
    %v810 = vadd.f32 %v292, %v809
    %811 = vdwg.mxu0
    %v812 = vadd.f32 %v171, %v770
    %v813 = vxor.u32 %v812, 2147483648
    %v814 = vmul.f32 %v813, 1.442695
    %v815 = vpow.pop %v814
    %v816 = vadd.f32 %v815, 1.0
    %v817 = vrcp.pop %v816
    %v818 = vmul.f32 %v816, %v817
    %v819 = vsub.f32 1.0, %v818
    %v820 = vmul.f32 %v817, %v819
    %v821 = vadd.f32 %v817, %v820
    %vm822 = vweird.f32 %v816
    %vm823 = vweird.f32 %v817
    %vm824 = vmor %vm822, %vm823
    %v825 = vsel %vm824, %v817, %v821
    %v826 = vand.u32 2147483647, %v816
    %vm827 = vcmp.eq.f32.partialorder %v826, 8.507059e+37
    %v828 = vand.u32 %v816, 2147483648
    %v829 = vor.u32 1.1754944e-38, %v828
    %v830 = vsel %vm827, %v829, %v825
    %v831 = vmul.f32 1.0, %v830
    %v832 = vadd.f32 %v220, %v790
    %v833 = vxor.u32 %v832, 2147483648
    %v834 = vmul.f32 %v833, 1.442695
    %v835 = vpow.pop %v834
    %v836 = vadd.f32 %v835, 1.0
    %v837 = vrcp.pop %v836
    %v838 = vmul.f32 %v836, %v837
    %v839 = vsub.f32 1.0, %v838
    %v840 = vmul.f32 %v837, %v839
    %v841 = vadd.f32 %v837, %v840
    %vm842 = vweird.f32 %v836
    %vm843 = vweird.f32 %v837
    %vm844 = vmor %vm842, %vm843
    %v845 = vsel %vm844, %v837, %v841
    %v846 = vand.u32 2147483647, %v836
    %vm847 = vcmp.eq.f32.partialorder %v846, 8.507059e+37
    %v848 = vand.u32 %v836, 2147483648
    %v849 = vor.u32 1.1754944e-38, %v848
    %v850 = vsel %vm847, %v849, %v845
    %v851 = vmul.f32 1.0, %v850
    %v852 = vmul.f32 %v831, %v810
    %v853 = vadd.f32 %v269, %v852
    %v854 = vtanh.pop %v853
    %v855 = vsub.f32 1.0, %v851
    %v856 = vmul.f32 %v855, %v854
    %v857 = vmul.f32 %v851, %v748
    %v858 = vadd.f32 %v856, %v857
    %v860 = vsel %vm308, %v858, 0
    %862 = vmatpush.msra.mxu0 0.0
    %863 = vmatpush.msra.mxu0 0.0
    %864 = vmatpush.msra.mxu0 0.0
    %865 = vmatpush.msra.mxu0 0.0
    %866 = vmatpush.msra.mxu0 0.0
    %867 = vmatpush.msra.mxu0 0.0
    %868 = vmatpush.msra.mxu0 0.0
    %869 = vmatpush.msra.mxu0 0.0
    %870 = vmatpush.msra.mxu0 0.0
    %871 = vmatpush.msra.mxu0 0.0
    %872 = vmatpush.msra.mxu0 0.0
    %873 = vmatpush.msra.mxu0 0.0
    %874 = vmatpush.msra.mxu0 %v297
    %875 = vmatpush.msra.mxu0 %v296
    %876 = vmatpush.msra.mxu0 %v295
    %877 = vmatpush.msra.mxu0 %v294
    %878 = vmatmul.f32.gmra.mxu0 %v860
    %v879 = vpop.f32.mrf.mxu0
    %v880 = vadd.f32 %v282, %v879
    %881 = vdwg.mxu0
    %882 = vmatpush.msra.mxu0 0.0
    %883 = vmatpush.msra.mxu0 0.0
    %884 = vmatpush.msra.mxu0 0.0
    %885 = vmatpush.msra.mxu0 0.0
    %886 = vmatpush.msra.mxu0 0.0
    %887 = vmatpush.msra.mxu0 0.0
    %888 = vmatpush.msra.mxu0 0.0
    %889 = vmatpush.msra.mxu0 0.0
    %890 = vmatpush.msra.mxu0 0.0
    %891 = vmatpush.msra.mxu0 0.0
    %892 = vmatpush.msra.mxu0 0.0
    %893 = vmatpush.msra.mxu0 0.0
    %894 = vmatpush.msra.mxu0 %v302
    %895 = vmatpush.msra.mxu0 %v301
    %896 = vmatpush.msra.mxu0 %v300
    %897 = vmatpush.msra.mxu0 %v299
    %898 = vmatmul.f32.gmra.mxu0 %v860
    %v899 = vpop.f32.mrf.mxu0
    %v900 = vadd.f32 %v287, %v899
    %901 = vdwg.mxu0
    %902 = vmatpush.msra.mxu0 0.0
    %903 = vmatpush.msra.mxu0 0.0
    %904 = vmatpush.msra.mxu0 0.0
    %905 = vmatpush.msra.mxu0 0.0
    %906 = vmatpush.msra.mxu0 0.0
    %907 = vmatpush.msra.mxu0 0.0
    %908 = vmatpush.msra.mxu0 0.0
    %909 = vmatpush.msra.mxu0 0.0
    %910 = vmatpush.msra.mxu0 0.0
    %911 = vmatpush.msra.mxu0 0.0
    %912 = vmatpush.msra.mxu0 0.0
    %913 = vmatpush.msra.mxu0 0.0
    %914 = vmatpush.msra.mxu0 %v307
    %915 = vmatpush.msra.mxu0 %v306
    %916 = vmatpush.msra.mxu0 %v305
    %917 = vmatpush.msra.mxu0 %v304
    %918 = vmatmul.f32.gmra.mxu0 %v860
    %v919 = vpop.f32.mrf.mxu0
    %v920 = vadd.f32 %v292, %v919
    %921 = vdwg.mxu0
    %v922 = vadd.f32 %v174, %v880
    %v923 = vxor.u32 %v922, 2147483648
    %v924 = vmul.f32 %v923, 1.442695
    %v925 = vpow.pop %v924
    %v926 = vadd.f32 %v925, 1.0
    %v927 = vrcp.pop %v926
    %v928 = vmul.f32 %v926, %v927
    %v929 = vsub.f32 1.0, %v928
    %v930 = vmul.f32 %v927, %v929
    %v931 = vadd.f32 %v927, %v930
    %vm932 = vweird.f32 %v926
    %vm933 = vweird.f32 %v927
    %vm934 = vmor %vm932, %vm933
    %v935 = vsel %vm934, %v927, %v931
    %v936 = vand.u32 2147483647, %v926
    %vm937 = vcmp.eq.f32.partialorder %v936, 8.507059e+37
    %v938 = vand.u32 %v926, 2147483648
    %v939 = vor.u32 1.1754944e-38, %v938
    %v940 = vsel %vm937, %v939, %v935
    %v941 = vmul.f32 1.0, %v940
    %v942 = vadd.f32 %v223, %v900
    %v943 = vxor.u32 %v942, 2147483648
    %v944 = vmul.f32 %v943, 1.442695
    %v945 = vpow.pop %v944
    %v946 = vadd.f32 %v945, 1.0
    %v947 = vrcp.pop %v946
    %v948 = vmul.f32 %v946, %v947
    %v949 = vsub.f32 1.0, %v948
    %v950 = vmul.f32 %v947, %v949
    %v951 = vadd.f32 %v947, %v950
    %vm952 = vweird.f32 %v946
    %vm953 = vweird.f32 %v947
    %vm954 = vmor %vm952, %vm953
    %v955 = vsel %vm954, %v947, %v951
    %v956 = vand.u32 2147483647, %v946
    %vm957 = vcmp.eq.f32.partialorder %v956, 8.507059e+37
    %v958 = vand.u32 %v946, 2147483648
    %v959 = vor.u32 1.1754944e-38, %v958
    %v960 = vsel %vm957, %v959, %v955
    %v961 = vmul.f32 1.0, %v960
    %v962 = vmul.f32 %v941, %v920
    %v963 = vadd.f32 %v272, %v962
    %v964 = vtanh.pop %v963
    %v965 = vsub.f32 1.0, %v961
    %v966 = vmul.f32 %v965, %v964
    %v967 = vmul.f32 %v961, %v858
    %v968 = vadd.f32 %v966, %v967
    %v970 = vsel %vm308, %v968, 0
    %972 = vmatpush.msra.mxu0 0.0
    %973 = vmatpush.msra.mxu0 0.0
    %974 = vmatpush.msra.mxu0 0.0
    %975 = vmatpush.msra.mxu0 0.0
    %976 = vmatpush.msra.mxu0 0.0
    %977 = vmatpush.msra.mxu0 0.0
    %978 = vmatpush.msra.mxu0 0.0
    %979 = vmatpush.msra.mxu0 0.0
    %980 = vmatpush.msra.mxu0 0.0
    %981 = vmatpush.msra.mxu0 0.0
    %982 = vmatpush.msra.mxu0 0.0
    %983 = vmatpush.msra.mxu0 0.0
    %984 = vmatpush.msra.mxu0 %v297
    %985 = vmatpush.msra.mxu0 %v296
    %986 = vmatpush.msra.mxu0 %v295
    %987 = vmatpush.msra.mxu0 %v294
    %988 = vmatmul.f32.gmra.mxu0 %v970
    %v989 = vpop.f32.mrf.mxu0
    %v990 = vadd.f32 %v282, %v989
    %991 = vdwg.mxu0
    %992 = vmatpush.msra.mxu0 0.0
    %993 = vmatpush.msra.mxu0 0.0
    %994 = vmatpush.msra.mxu0 0.0
    %995 = vmatpush.msra.mxu0 0.0
    %996 = vmatpush.msra.mxu0 0.0
    %997 = vmatpush.msra.mxu0 0.0
    %998 = vmatpush.msra.mxu0 0.0
    %999 = vmatpush.msra.mxu0 0.0
    %1000 = vmatpush.msra.mxu0 0.0
    %1001 = vmatpush.msra.mxu0 0.0
    %1002 = vmatpush.msra.mxu0 0.0
    %1003 = vmatpush.msra.mxu0 0.0
    %1004 = vmatpush.msra.mxu0 %v302
    %1005 = vmatpush.msra.mxu0 %v301
    %1006 = vmatpush.msra.mxu0 %v300
    %1007 = vmatpush.msra.mxu0 %v299
    %1008 = vmatmul.f32.gmra.mxu0 %v970
    %v1009 = vpop.f32.mrf.mxu0
    %v1010 = vadd.f32 %v287, %v1009
    %1011 = vdwg.mxu0
    %1012 = vmatpush.msra.mxu0 0.0
    %1013 = vmatpush.msra.mxu0 0.0
    %1014 = vmatpush.msra.mxu0 0.0
    %1015 = vmatpush.msra.mxu0 0.0
    %1016 = vmatpush.msra.mxu0 0.0
    %1017 = vmatpush.msra.mxu0 0.0
    %1018 = vmatpush.msra.mxu0 0.0
    %1019 = vmatpush.msra.mxu0 0.0
    %1020 = vmatpush.msra.mxu0 0.0
    %1021 = vmatpush.msra.mxu0 0.0
    %1022 = vmatpush.msra.mxu0 0.0
    %1023 = vmatpush.msra.mxu0 0.0
    %1024 = vmatpush.msra.mxu0 %v307
    %1025 = vmatpush.msra.mxu0 %v306
    %1026 = vmatpush.msra.mxu0 %v305
    %1027 = vmatpush.msra.mxu0 %v304
    %1028 = vmatmul.f32.gmra.mxu0 %v970
    %v1029 = vpop.f32.mrf.mxu0
    %v1030 = vadd.f32 %v292, %v1029
    %1031 = vdwg.mxu0
    %v1032 = vadd.f32 %v177, %v990
    %v1033 = vxor.u32 %v1032, 2147483648
    %v1034 = vmul.f32 %v1033, 1.442695
    %v1035 = vpow.pop %v1034
    %v1036 = vadd.f32 %v1035, 1.0
    %v1037 = vrcp.pop %v1036
    %v1038 = vmul.f32 %v1036, %v1037
    %v1039 = vsub.f32 1.0, %v1038
    %v1040 = vmul.f32 %v1037, %v1039
    %v1041 = vadd.f32 %v1037, %v1040
    %vm1042 = vweird.f32 %v1036
    %vm1043 = vweird.f32 %v1037
    %vm1044 = vmor %vm1042, %vm1043
    %v1045 = vsel %vm1044, %v1037, %v1041
    %v1046 = vand.u32 2147483647, %v1036
    %vm1047 = vcmp.eq.f32.partialorder %v1046, 8.507059e+37
    %v1048 = vand.u32 %v1036, 2147483648
    %v1049 = vor.u32 1.1754944e-38, %v1048
    %v1050 = vsel %vm1047, %v1049, %v1045
    %v1051 = vmul.f32 1.0, %v1050
    %v1052 = vadd.f32 %v226, %v1010
    %v1053 = vxor.u32 %v1052, 2147483648
    %v1054 = vmul.f32 %v1053, 1.442695
    %v1055 = vpow.pop %v1054
    %v1056 = vadd.f32 %v1055, 1.0
    %v1057 = vrcp.pop %v1056
    %v1058 = vmul.f32 %v1056, %v1057
    %v1059 = vsub.f32 1.0, %v1058
    %v1060 = vmul.f32 %v1057, %v1059
    %v1061 = vadd.f32 %v1057, %v1060
    %vm1062 = vweird.f32 %v1056
    %vm1063 = vweird.f32 %v1057
    %vm1064 = vmor %vm1062, %vm1063
    %v1065 = vsel %vm1064, %v1057, %v1061
    %v1066 = vand.u32 2147483647, %v1056
    %vm1067 = vcmp.eq.f32.partialorder %v1066, 8.507059e+37
    %v1068 = vand.u32 %v1056, 2147483648
    %v1069 = vor.u32 1.1754944e-38, %v1068
    %v1070 = vsel %vm1067, %v1069, %v1065
    %v1071 = vmul.f32 1.0, %v1070
    %v1072 = vmul.f32 %v1051, %v1030
    %v1073 = vadd.f32 %v275, %v1072
    %v1074 = vtanh.pop %v1073
    %v1075 = vsub.f32 1.0, %v1071
    %v1076 = vmul.f32 %v1075, %v1074
    %v1077 = vmul.f32 %v1071, %v968
    %v1078 = vadd.f32 %v1076, %v1077
    %v1080 = vsel %vm308, %v1078, 0
    %1082 = vmatpush.msra.mxu0 0.0
    %1083 = vmatpush.msra.mxu0 0.0
    %1084 = vmatpush.msra.mxu0 0.0
    %1085 = vmatpush.msra.mxu0 0.0
    %1086 = vmatpush.msra.mxu0 0.0
    %1087 = vmatpush.msra.mxu0 0.0
    %1088 = vmatpush.msra.mxu0 0.0
    %1089 = vmatpush.msra.mxu0 0.0
    %1090 = vmatpush.msra.mxu0 0.0
    %1091 = vmatpush.msra.mxu0 0.0
    %1092 = vmatpush.msra.mxu0 0.0
    %1093 = vmatpush.msra.mxu0 0.0
    %1094 = vmatpush.msra.mxu0 %v297
    %1095 = vmatpush.msra.mxu0 %v296
    %1096 = vmatpush.msra.mxu0 %v295
    %1097 = vmatpush.msra.mxu0 %v294
    %1098 = vmatmul.f32.gmra.mxu0 %v1080
    %v1099 = vpop.f32.mrf.mxu0
    %v1100 = vadd.f32 %v282, %v1099
    %1101 = vdwg.mxu0
    %1102 = vmatpush.msra.mxu0 0.0
    %1103 = vmatpush.msra.mxu0 0.0
    %1104 = vmatpush.msra.mxu0 0.0
    %1105 = vmatpush.msra.mxu0 0.0
    %1106 = vmatpush.msra.mxu0 0.0
    %1107 = vmatpush.msra.mxu0 0.0
    %1108 = vmatpush.msra.mxu0 0.0
    %1109 = vmatpush.msra.mxu0 0.0
    %1110 = vmatpush.msra.mxu0 0.0
    %1111 = vmatpush.msra.mxu0 0.0
    %1112 = vmatpush.msra.mxu0 0.0
    %1113 = vmatpush.msra.mxu0 0.0
    %1114 = vmatpush.msra.mxu0 %v302
    %1115 = vmatpush.msra.mxu0 %v301
    %1116 = vmatpush.msra.mxu0 %v300
    %1117 = vmatpush.msra.mxu0 %v299
    %1118 = vmatmul.f32.gmra.mxu0 %v1080
    %v1119 = vpop.f32.mrf.mxu0
    %v1120 = vadd.f32 %v287, %v1119
    %1121 = vdwg.mxu0
    %1122 = vmatpush.msra.mxu0 0.0
    %1123 = vmatpush.msra.mxu0 0.0
    %1124 = vmatpush.msra.mxu0 0.0
    %1125 = vmatpush.msra.mxu0 0.0
    %1126 = vmatpush.msra.mxu0 0.0
    %1127 = vmatpush.msra.mxu0 0.0
    %1128 = vmatpush.msra.mxu0 0.0
    %1129 = vmatpush.msra.mxu0 0.0
    %1130 = vmatpush.msra.mxu0 0.0
    %1131 = vmatpush.msra.mxu0 0.0
    %1132 = vmatpush.msra.mxu0 0.0
    %1133 = vmatpush.msra.mxu0 0.0
    %1134 = vmatpush.msra.mxu0 %v307
    %1135 = vmatpush.msra.mxu0 %v306
    %1136 = vmatpush.msra.mxu0 %v305
    %1137 = vmatpush.msra.mxu0 %v304
    %1138 = vmatmul.f32.gmra.mxu0 %v1080
    %v1139 = vpop.f32.mrf.mxu0
    %v1140 = vadd.f32 %v292, %v1139
    %1141 = vdwg.mxu0
    %v1142 = vadd.f32 %v180, %v1100
    %v1143 = vxor.u32 %v1142, 2147483648
    %v1144 = vmul.f32 %v1143, 1.442695
    %v1145 = vpow.pop %v1144
    %v1146 = vadd.f32 %v1145, 1.0
    %v1147 = vrcp.pop %v1146
    %v1148 = vmul.f32 %v1146, %v1147
    %v1149 = vsub.f32 1.0, %v1148
    %v1150 = vmul.f32 %v1147, %v1149
    %v1151 = vadd.f32 %v1147, %v1150
    %vm1152 = vweird.f32 %v1146
    %vm1153 = vweird.f32 %v1147
    %vm1154 = vmor %vm1152, %vm1153
    %v1155 = vsel %vm1154, %v1147, %v1151
    %v1156 = vand.u32 2147483647, %v1146
    %vm1157 = vcmp.eq.f32.partialorder %v1156, 8.507059e+37
    %v1158 = vand.u32 %v1146, 2147483648
    %v1159 = vor.u32 1.1754944e-38, %v1158
    %v1160 = vsel %vm1157, %v1159, %v1155
    %v1161 = vmul.f32 1.0, %v1160
    %v1162 = vadd.f32 %v229, %v1120
    %v1163 = vxor.u32 %v1162, 2147483648
    %v1164 = vmul.f32 %v1163, 1.442695
    %v1165 = vpow.pop %v1164
    %v1166 = vadd.f32 %v1165, 1.0
    %v1167 = vrcp.pop %v1166
    %v1168 = vmul.f32 %v1166, %v1167
    %v1169 = vsub.f32 1.0, %v1168
    %v1170 = vmul.f32 %v1167, %v1169
    %v1171 = vadd.f32 %v1167, %v1170
    %vm1172 = vweird.f32 %v1166
    %vm1173 = vweird.f32 %v1167
    %vm1174 = vmor %vm1172, %vm1173
    %v1175 = vsel %vm1174, %v1167, %v1171
    %v1176 = vand.u32 2147483647, %v1166
    %vm1177 = vcmp.eq.f32.partialorder %v1176, 8.507059e+37
    %v1178 = vand.u32 %v1166, 2147483648
    %v1179 = vor.u32 1.1754944e-38, %v1178
    %v1180 = vsel %vm1177, %v1179, %v1175
    %v1181 = vmul.f32 1.0, %v1180
    %v1182 = vmul.f32 %v1161, %v1140
    %v1183 = vadd.f32 %v278, %v1182
    %v1184 = vtanh.pop %v1183
    %v1185 = vsub.f32 1.0, %v1181
    %v1186 = vmul.f32 %v1185, %v1184
    %v1187 = vmul.f32 %v1181, %v1078
    %v1188 = vadd.f32 %v1186, %v1187
    %v1189 = vld [vmem:[#allocation10] sm:$0xff]
    %v1190 = vld [vmem:[#allocation10 + $0x8] sm:$0xff]
    %v1191 = vld [vmem:[#allocation10 + $0x10] sm:$0xff]
    %v1192 = vld [vmem:[#allocation10 + $0x18] sm:$0xff]
    %v1194 = vsel %vm308, %v1188, 0
    %1196 = vmatpush.msra.mxu0 0.0
    %1197 = vmatpush.msra.mxu0 0.0
    %1198 = vmatpush.msra.mxu0 0.0
    %1199 = vmatpush.msra.mxu0 0.0
    %1200 = vmatpush.msra.mxu0 0.0
    %1201 = vmatpush.msra.mxu0 0.0
    %1202 = vmatpush.msra.mxu0 0.0
    %1203 = vmatpush.msra.mxu0 0.0
    %1204 = vmatpush.msra.mxu0 0.0
    %1205 = vmatpush.msra.mxu0 0.0
    %1206 = vmatpush.msra.mxu0 0.0
    %1207 = vmatpush.msra.mxu0 0.0
    %1208 = vmatpush.msra.mxu0 %v1192
    %1209 = vmatpush.msra.mxu0 %v1191
    %1210 = vmatpush.msra.mxu0 %v1190
    %1211 = vmatpush.msra.mxu0 %v1189
    %1212 = vmatmul.f32.gmra.mxu0 %v1194
    %v1213 = vpop.f32.mrf.mxu0
    %v1214 = vadd.f32 0.0, %v1213
    %1215 = vdwg.mxu0
    %1216 = vst [vmem:[#allocation11] sm:$0xff] %v1214
    // Predicated region
    $region46: #{tpu_custom_call.1} parent=1 // pred_check
      _
    $region47: #{tpu_custom_call.1} parent=1 // pred_check_branch
      %1218 = sbr.rel (0) target = $region49
    $region48: #{tpu_custom_call.1} parent=1 // pred_region
      %1220 = vsyncadd [#allocation4], 0
      %s1222 = sshll.u32 [#allocation11], 4
      %s1223 = int_to_ptr.vmem [resolvable:$true] %s1222
      %s1224 = sshll.u32 %s6, 4
      %s1225 = int_to_ptr.hbm [resolvable:$true] %s1224
      %1227 = dma.vmem_to_hbm [thread:$0]  %s1223, 128, %s1225, [#allocation4]
    $region49: #{tpu_custom_call.1} parent=1 // pred_fallthru
      _
    // Predicated region
    $region50: #{tpu_custom_call.1} parent=1 // pred_check
      _
    $region51: #{tpu_custom_call.1} parent=1 // pred_check_branch
      %1229 = sbr.rel (0) target = $region53
    $region52: #{tpu_custom_call.1} parent=1 // pred_region
      %1231 = dma.done [#allocation4], 128
    $region53: #{tpu_custom_call.1} parent=1 // pred_fallthru
      _
    %1232 = vsyncpa [#allocation3], 1
    %1233 = vsyncpa [#allocation6], 1
    %1234 = vsyncpa [#allocation9], 1
    %1235 = vsyncpa [#allocation4], 1

</llo_original>
